<compile_context>
chip_gen: v7x
topology: tpu7x:2x2x1
jax: 0.10.0
libtpu: 0.0.40
codegen_flags: <defaults>
</compile_context>

<pallas_src>
import functools

import numpy as np
import jax
import jax.numpy as jnp
from jax.experimental import pallas as pl
from jax.experimental.pallas import tpu as pltpu

EPS = 1e-5


# ------------------------------ Pallas kernel -------------------------------
def _fused_resblocks_kernel(x_ref, s1_ref, t1_ref, c1_ref, bias_ref,
                            w1_ref, wc_ref, o_ref, xpad_ref, hx_ref,
                            *, nlayers, cin, cout):
    """All residual blocks fused; the activation never leaves VMEM between layers.

    Lane-dense (C, L) layout: spatial axis on the 128-lane axis, so every 1x1
    ConvTranspose1d is Wᵀ @ x with unmasked lane-dense stores. Parameters are
    pre-folded (BN affines + a/b blend) and zero-padded/stacked to cmax.
    """
    # TODO(synk): nn.Dropout(p=0.5) has no deterministic train-mode equivalent; eval-mode identity.
    cmax = w1_ref.shape[1]
    if cin < cmax:
        # Only the true cin channels were DMA'd from HBM; pad to cmax in VMEM (cheap).
        xpad_ref[...] = jnp.zeros_like(xpad_ref)
        xpad_ref[0:cin, :] = x_ref[0]
        x = xpad_ref[...]
    else:
        x = x_ref[0]                                           # (cmax, TILE_L) f32

    for l in range(nlayers):                                   # static unroll over layers
        s1 = s1_ref[l]                                         # (cmax, 1) lane-broadcast vectors
        t1 = t1_ref[l]
        c1 = c1_ref[l]
        bias = bias_ref[l]
        h = jnp.maximum(x * s1 + t1, 0.0)                      # bn1 (folded) + relu
        h = jnp.dot(w1_ref[l], h.astype(w1_ref.dtype),
                    preferred_element_type=jnp.float32) + c1   # conv1 (+bn2 folded)
        h = jnp.maximum(h, 0.0)                                # relu
        # Fused output matmul: [b*W2ᵀ | a*su*Wuᵀ] @ [h; x]  (one K=2*cmax dot instead
        # of two K=cmax dots -> half the MXU push/drain sequences per layer).
        hx_ref[0:cmax, :] = h
        hx_ref[cmax:2 * cmax, :] = x
        x = jnp.dot(wc_ref[l], hx_ref[...].astype(wc_ref.dtype),
                    preferred_element_type=jnp.float32) + bias

    o_ref[0] = x[0:cout, :].astype(o_ref.dtype)                # emit out_channels directly


# --------------------------- tiling / VMEM budgeting -------------------------
def _vmem_capacity_bytes():
    try:
        return int(pltpu.get_tpu_info().vmem_capacity_bytes)
    except Exception:
        return 64 << 20          # conservative fallback (v7x per-TC physical VMEM)


def _vmem_estimate_bytes(cin, cout, cmax, nlayers, tile_l, wbytes):
    f32 = 4
    act_in = 2 * max(cin, 8) * tile_l * f32            # double-buffered input tile
    act_out = 2 * max(cout, 8) * tile_l * f32           # double-buffered output tile
    scratch = (cmax + 2 * cmax) * tile_l * f32           # xpad + hx scratch
    live = 3 * cmax * tile_l * f32                    # x, h, dot result
    weights = 2 * nlayers * (cmax * cmax + 2 * cmax * cmax) * wbytes   # 2 pipeline buffers
    vecs = 2 * 4 * nlayers * cmax * 128 * f32         # (...,1) slabs pad to 128 lanes
    return act_in + act_out + scratch + live + weights + vecs


def _tile_candidates(L_pad):
    # multiples of 128 that divide L_pad, descending (L_pad is a multiple of 128)
    return [t for t in range(L_pad, 0, -128) if L_pad % t == 0]


def _choose_tile_l(L_pad, n_batch, est_fn, max_lanes, budget):
    cands = _tile_candidates(L_pad)
    tile = cands[-1]                                    # 128 always divides L_pad
    for t in cands:
        if t <= max_lanes and est_fn(t) <= budget:
            tile = t
            break
    # v7x has 2 TensorCores: make sure the parallel grid has >= 2 steps when possible.
    if n_batch * (L_pad // tile) < 2:
        for t in cands:
            if t < tile and n_batch * (L_pad // t) >= 2 and est_fn(t) <= budget:
                tile = t
                break
    return tile


# --------------------------- pallas wrapper ----------------------------------
@functools.partial(jax.jit, static_argnums=(2,))
def feature_generator_forward(z, packed, out_channels):
    """z: (N, C_in, L) NCL exactly like the PyTorch module. Returns (N, C_out, L)."""
    N, cin, L = z.shape
    nlayers, cmax, _ = packed["w1T"].shape
    cout = int(out_channels)
    z = z.astype(jnp.float32)

    # Pad spatial axis to a multiple of 128 (unmasked lane-dense tiles), slice back after.
    L_pad = -(-L // 128) * 128
    if L_pad != L:
        z = jnp.pad(z, ((0, 0), (0, 0), (0, L_pad - L)))

    cap = _vmem_capacity_bytes()
    budget = int(cap * 0.55)                              # target for our buffers
    wbytes = jnp.dtype(packed["w1T"].dtype).itemsize
    est = functools.partial(_vmem_estimate_bytes, cin, cout, cmax, nlayers, wbytes=wbytes)
    max_lanes = 8192 if cmax <= 128 else 2048
    tile_l = _choose_tile_l(L_pad, N, est, max_lanes, budget)
    grid = (N, L_pad // tile_l)
    vmem_limit = int(min(max(est(tile_l) + (8 << 20), 24 << 20), int(cap * 0.75)))

    kernel = functools.partial(_fused_resblocks_kernel, nlayers=nlayers, cin=cin, cout=cout)
    resident = lambda n, j: (0, 0, 0)   # constant index -> weights stay resident in VMEM
    # NOTE: for very large cmax on v7x, the weight stacks could additionally be
    # single-buffered (memory_space=pl.ANY + one-time DMA) and/or packed in bf16.
    out = pl.pallas_call(
        kernel,
        out_shape=jax.ShapeDtypeStruct((N, cout, L_pad), jnp.float32),
        grid=grid,
        in_specs=[
            pl.BlockSpec((1, cin, tile_l), lambda n, j: (n, 0, j)),   # unpadded activation tile
            pl.BlockSpec(packed["s1"].shape, resident),
            pl.BlockSpec(packed["t1"].shape, resident),
            pl.BlockSpec(packed["c1"].shape, resident),
            pl.BlockSpec(packed["bias"].shape, resident),
            pl.BlockSpec(packed["w1T"].shape, resident),
            pl.BlockSpec(packed["wcT"].shape, resident),
        ],
        out_specs=pl.BlockSpec((1, cout, tile_l), lambda n, j: (n, 0, j)),
        scratch_shapes=[pltpu.VMEM((cmax, tile_l), jnp.float32),       # xpad
                        pltpu.VMEM((2 * cmax, tile_l), jnp.float32)],  # hx
        compiler_params=pltpu.CompilerParams(
            dimension_semantics=("parallel", "parallel"),
            vmem_limit_bytes=vmem_limit),
    )(z, packed["s1"], packed["t1"], packed["c1"], packed["bias"],
      packed["w1T"], packed["wcT"])

    if L_pad != L:
        out = out[:, :, :L]
    return out


# --------------------------- parameter building ------------------------------
def _bn_eval_affine(gamma, beta, running_mean=0.0, running_var=1.0):
    # Eval-mode BatchNorm1d fold. Fresh (untrained) running stats by default;
    # for a trained checkpoint pass its real running_mean / running_var here.
    scale = gamma / jnp.sqrt(running_var + EPS)
    shift = beta - running_mean * scale
    return scale, shift


def init_resblock(key, cin, cout):
    ks = jax.random.split(key, 12)
    return dict(
        g1=1.0 + 0.1 * jax.random.normal(ks[0], (cin,), jnp.float32),
        b1=0.1 * jax.random.normal(ks[1], (cin,), jnp.float32),
        w1=0.3 * jax.random.normal(ks[2], (cin, cin), jnp.float32),   # ConvT1d(Cin->Cin,k=1)
        c1=0.1 * jax.random.normal(ks[3], (cin,), jnp.float32),
        g2=1.0 + 0.1 * jax.random.normal(ks[4], (cin,), jnp.float32),
        b2=0.1 * jax.random.normal(ks[5], (cin,), jnp.float32),
        w2=0.3 * jax.random.normal(ks[6], (cin, cout), jnp.float32),  # ConvT1d(Cin->Cout,k=1)
        c2=0.1 * jax.random.normal(ks[7], (cout,), jnp.float32),
        wu=0.3 * jax.random.normal(ks[8], (cin, cout), jnp.float32),  # upsample ConvT1d
        cu=0.1 * jax.random.normal(ks[9], (cout,), jnp.float32),
        gu=1.0 + 0.1 * jax.random.normal(ks[10], (cout,), jnp.float32),
        bu=0.1 * jax.random.normal(ks[11], (cout,), jnp.float32),
    )


def build_feature_generator(key, in_channels, out_channels, l):
    """Replicates make_layers_resnet_decoder_feature_generator channel schedule (np.log as in spec)."""
    num_decompr_layers = int(1.0 / float(l) * np.floor(np.log(out_channels / float(in_channels))))
    chan_pairs = []
    for k in range(num_decompr_layers):
        chan_pairs.append((in_channels * 2 ** (l * k), in_channels * 2 ** (l * (k + 1))))
    if in_channels * 2 ** (l * num_decompr_layers) < out_channels:
        chan_pairs.append((in_channels * 2 ** (l * num_decompr_layers), out_channels))
    params = []
    for (cin, cout) in chan_pairs:
        key, sub = jax.random.split(key)
        params.append(init_resblock(sub, cin, cout))
    return params


def fold_and_pack(raw_params, a, b, weight_dtype=jnp.float32):
    """Fold BN affines + a/b blend into the weights, transpose for the (C, L) lane-dense
    layout, fuse [b*W2ᵀ | a*su*Wuᵀ], zero-pad to cmax and stack per-layer params."""
    cmax = 0
    for p in raw_params:
        cmax = max(cmax, p["w2"].shape[0], p["w2"].shape[1])
    s1s, t1s, c1s, biases, w1s, wcs = [], [], [], [], [], []
    for p in raw_params:
        cin, cout = p["w2"].shape
        s1, t1 = _bn_eval_affine(p["g1"], p["b1"])
        s2, t2 = _bn_eval_affine(p["g2"], p["b2"])
        su, tu = _bn_eval_affine(p["gu"], p["bu"])
        w1f = p["w1"] * s2[None, :]                    # fold bn2 scale into conv1 columns
        c1f = p["c1"] * s2 + t2
        w2f = b * p["w2"]                              # fold b into conv2
        wuf = a * (p["wu"] * su[None, :])              # fold a and bn_u scale into upsample conv
        bias = a * (p["cu"] * su + tu) + b * p["c2"]   # merged residual+main biases
        w1T = jnp.pad(w1f.T, ((0, cmax - cin), (0, cmax - cin)))
        w2T = jnp.pad(w2f.T, ((0, cmax - cout), (0, cmax - cin)))
        wuT = jnp.pad(wuf.T, ((0, cmax - cout), (0, cmax - cin)))
        w1s.append(w1T)
        wcs.append(jnp.concatenate([w2T, wuT], axis=1))        # (cmax, 2*cmax): cols [0,cmax)->h, [cmax,2cmax)->x
        s1s.append(jnp.pad(s1, (0, cmax - cin))[:, None])
        t1s.append(jnp.pad(t1, (0, cmax - cin))[:, None])
        c1s.append(jnp.pad(c1f, (0, cmax - cin))[:, None])
        biases.append(jnp.pad(bias, (0, cmax - cout))[:, None])
    return dict(
        s1=jnp.stack(s1s).astype(jnp.float32),
        t1=jnp.stack(t1s).astype(jnp.float32),
        c1=jnp.stack(c1s).astype(jnp.float32),
        bias=jnp.stack(biases).astype(jnp.float32),
        w1T=jnp.stack(w1s).astype(weight_dtype),
        wcT=jnp.stack(wcs).astype(weight_dtype),
    )


# ------------------------------ pure-JAX reference ---------------------------
def feature_generator_ref(z, raw_params, a, b):
    """Unfolded, unfused reference (validates the fold/pack/layout), exact f32 matmuls."""
    N, C, L = z.shape
    hp = jax.lax.Precision.HIGHEST
    x = jnp.transpose(z, (0, 2, 1)).reshape(N * L, C)
    for p in raw_params:
        s1, t1 = _bn_eval_affine(p["g1"], p["b1"])
        s2, t2 = _bn_eval_affine(p["g2"], p["b2"])
        su, tu = _bn_eval_affine(p["gu"], p["bu"])
        h = jnp.maximum(x * s1 + t1, 0.0)
        h = jnp.dot(h, p["w1"], precision=hp) + p["c1"]
        h = jnp.maximum(h * s2 + t2, 0.0)
        h = jnp.dot(h, p["w2"], precision=hp) + p["c2"]
        r = (jnp.dot(x, p["wu"], precision=hp) + p["cu"]) * su + tu
        x = a * r + b * h
    cout = x.shape[1]
    return jnp.transpose(x.reshape(N, L, cout), (0, 2, 1))


if __name__ == "__main__":
    # FeatureGenerator(in_channels=4, out_channels=32, a=2.0, b=0.3, generation_power=1)
    # -> residual blocks 4->8, 8->16, 16->32
    N, C_IN, C_OUT, L = 2, 4, 32, 8
    A, B, GEN_POWER = 2.0, 0.3, 1

    key = jax.random.PRNGKey(0)
    key_z, key_p = jax.random.split(key)
    z = jax.random.normal(key_z, (N, C_IN, L), jnp.float32)

    raw = build_feature_generator(key_p, C_IN, C_OUT, GEN_POWER)
    # f32 weights here so the small test compares tightly against the f32 reference;
    # use weight_dtype=jnp.bfloat16 at production channel counts on v6e/v7x.
    packed = fold_and_pack(raw, A, B, weight_dtype=jnp.float32)

    out = feature_generator_forward(z, packed, C_OUT)
    out = jax.block_until_ready(out)

    ref = feature_generator_ref(z, raw, A, B)
    assert out.shape == (N, C_OUT, L), out.shape
    # Folded/fused kernel vs unfolded XLA reference: normalize the tolerance by the output
    # magnitude to accommodate possible MXU-pass rounding differences between the two paths.
    err = float(jnp.max(jnp.abs(out - ref)))
    scale = float(jnp.max(jnp.abs(ref)))
    assert err <= 5e-3 * (1.0 + scale), ("Pallas output mismatch vs JAX reference", err, scale)

    print("KERNEL_OK")
</pallas_src>

<mosaic_0001>
module attributes {stable_mosaic.version = 11 : i64} {
  func.func @_fused_resblocks_kernel(%arg0: i32, %arg1: i32, %arg2: memref<1x4x128xf32, #tpu.memory_space<vmem>>, %arg3: memref<3x32x1xf32, #tpu.memory_space<vmem>>, %arg4: memref<3x32x1xf32, #tpu.memory_space<vmem>>, %arg5: memref<3x32x1xf32, #tpu.memory_space<vmem>>, %arg6: memref<3x32x1xf32, #tpu.memory_space<vmem>>, %arg7: memref<3x32x32xf32, #tpu.memory_space<vmem>>, %arg8: memref<3x32x64xf32, #tpu.memory_space<vmem>>, %arg9: memref<1x32x128xf32, #tpu.memory_space<vmem>>, %arg10: memref<32x128xf32, #tpu.memory_space<vmem>>, %arg11: memref<64x128xf32, #tpu.memory_space<vmem>>) attributes {dimension_semantics = [#tpu.dimension_semantics<parallel>, #tpu.dimension_semantics<parallel>], iteration_bounds = array<i64: 2, 1>, scalar_prefetch = 0 : i64, scratch_operands = 2 : i64, tpu.core_type = #tpu.core_type<tc>, window_params = [{transform_indices = @transform_0, window_bounds = array<i64: 1, 4, 128>}, {pipeline_mode = #tpu.pipeline_mode<synchronous>, transform_indices = @transform_1, window_bounds = array<i64: 3, 32, 1>}, {pipeline_mode = #tpu.pipeline_mode<synchronous>, transform_indices = @transform_2, window_bounds = array<i64: 3, 32, 1>}, {pipeline_mode = #tpu.pipeline_mode<synchronous>, transform_indices = @transform_3, window_bounds = array<i64: 3, 32, 1>}, {pipeline_mode = #tpu.pipeline_mode<synchronous>, transform_indices = @transform_4, window_bounds = array<i64: 3, 32, 1>}, {pipeline_mode = #tpu.pipeline_mode<synchronous>, transform_indices = @transform_5, window_bounds = array<i64: 3, 32, 32>}, {pipeline_mode = #tpu.pipeline_mode<synchronous>, transform_indices = @transform_6, window_bounds = array<i64: 3, 32, 64>}, {transform_indices = @transform_7, window_bounds = array<i64: 1, 32, 128>}]} {
    %cst = arith.constant 0.000000e+00 : f32
    %0 = vector.broadcast %cst : f32 to vector<32x128xf32>
    %c0 = arith.constant 0 : index
    %c0_0 = arith.constant 0 : index
    %1 = vector.load %arg10[%c0, %c0_0] : memref<32x128xf32, #tpu.memory_space<vmem>>, vector<32x128xf32>
    tpu.vector_store %arg10[%c0, %c0_0], %0 {strides = array<i32>} : memref<32x128xf32, #tpu.memory_space<vmem>>, vector<32x128xf32>,
    %c0_1 = arith.constant 0 : index
    %c0_2 = arith.constant 0 : index
    %c0_3 = arith.constant 0 : index
    %2 = vector.load %arg2[%c0_1, %c0_2, %c0_3] : memref<1x4x128xf32, #tpu.memory_space<vmem>>, vector<1x4x128xf32>
    %3 = vector.shape_cast %2 : vector<1x4x128xf32> to vector<4x128xf32>
    %c0_4 = arith.constant 0 : index
    %c0_5 = arith.constant 0 : index
    %4 = vector.load %arg10[%c0_4, %c0_5] : memref<32x128xf32, #tpu.memory_space<vmem>>, vector<4x128xf32>
    tpu.vector_store %arg10[%c0_4, %c0_5], %3 {strides = array<i32>} : memref<32x128xf32, #tpu.memory_space<vmem>>, vector<4x128xf32>,
    %c0_6 = arith.constant 0 : index
    %c0_7 = arith.constant 0 : index
    %5 = vector.load %arg10[%c0_6, %c0_7] : memref<32x128xf32, #tpu.memory_space<vmem>>, vector<32x128xf32>
    %c0_8 = arith.constant 0 : index
    %c0_9 = arith.constant 0 : index
    %c0_10 = arith.constant 0 : index
    %6 = vector.load %arg3[%c0_8, %c0_9, %c0_10] : memref<3x32x1xf32, #tpu.memory_space<vmem>>, vector<1x32x1xf32>
    %7 = vector.shape_cast %6 : vector<1x32x1xf32> to vector<32x1xf32>
    %c0_11 = arith.constant 0 : index
    %c0_12 = arith.constant 0 : index
    %c0_13 = arith.constant 0 : index
    %8 = vector.load %arg4[%c0_11, %c0_12, %c0_13] : memref<3x32x1xf32, #tpu.memory_space<vmem>>, vector<1x32x1xf32>
    %9 = vector.shape_cast %8 : vector<1x32x1xf32> to vector<32x1xf32>
    %c0_14 = arith.constant 0 : index
    %c0_15 = arith.constant 0 : index
    %c0_16 = arith.constant 0 : index
    %10 = vector.load %arg5[%c0_14, %c0_15, %c0_16] : memref<3x32x1xf32, #tpu.memory_space<vmem>>, vector<1x32x1xf32>
    %11 = vector.shape_cast %10 : vector<1x32x1xf32> to vector<32x1xf32>
    %c0_17 = arith.constant 0 : index
    %c0_18 = arith.constant 0 : index
    %c0_19 = arith.constant 0 : index
    %12 = vector.load %arg6[%c0_17, %c0_18, %c0_19] : memref<3x32x1xf32, #tpu.memory_space<vmem>>, vector<1x32x1xf32>
    %13 = vector.shape_cast %12 : vector<1x32x1xf32> to vector<32x1xf32>
    %14 = vector.broadcast %7 : vector<32x1xf32> to vector<32x128xf32>
    %15 = arith.mulf %5, %14 : vector<32x128xf32>
    %16 = vector.broadcast %9 : vector<32x1xf32> to vector<32x128xf32>
    %17 = arith.addf %15, %16 : vector<32x128xf32>
    %cst_20 = arith.constant 0.000000e+00 : f32
    %18 = vector.broadcast %cst_20 : f32 to vector<32x128xf32>
    %19 = arith.maximumf %17, %18 : vector<32x128xf32>
    %c0_21 = arith.constant 0 : index
    %c0_22 = arith.constant 0 : index
    %c0_23 = arith.constant 0 : index
    %20 = vector.load %arg7[%c0_21, %c0_22, %c0_23] : memref<3x32x32xf32, #tpu.memory_space<vmem>>, vector<1x32x32xf32>
    %21 = vector.shape_cast %20 : vector<1x32x32xf32> to vector<32x32xf32>
    %cst_24 = arith.constant dense<0.000000e+00> : vector<32x128xf32>
    %22 = tpu.matmul %21, %19, %cst_24 {dimension_numbers = #tpu.dot_dimension_numbers<[1], [0], [0], [1], [0, 0, 1, 1], [], []>} : vector<32x32xf32>, vector<32x128xf32>, vector<32x128xf32> -> vector<32x128xf32>
    %23 = vector.broadcast %11 : vector<32x1xf32> to vector<32x128xf32>
    %24 = arith.addf %22, %23 : vector<32x128xf32>
    %cst_25 = arith.constant 0.000000e+00 : f32
    %25 = vector.broadcast %cst_25 : f32 to vector<32x128xf32>
    %26 = arith.maximumf %24, %25 : vector<32x128xf32>
    %c0_26 = arith.constant 0 : index
    %c0_27 = arith.constant 0 : index
    %27 = vector.load %arg11[%c0_26, %c0_27] : memref<64x128xf32, #tpu.memory_space<vmem>>, vector<32x128xf32>
    tpu.vector_store %arg11[%c0_26, %c0_27], %26 {strides = array<i32>} : memref<64x128xf32, #tpu.memory_space<vmem>>, vector<32x128xf32>,
    %c32 = arith.constant 32 : index
    %c0_28 = arith.constant 0 : index
    %28 = vector.load %arg11[%c32, %c0_28] : memref<64x128xf32, #tpu.memory_space<vmem>>, vector<32x128xf32>
    tpu.vector_store %arg11[%c32, %c0_28], %5 {strides = array<i32>} : memref<64x128xf32, #tpu.memory_space<vmem>>, vector<32x128xf32>,
    %c0_29 = arith.constant 0 : index
    %c0_30 = arith.constant 0 : index
    %c0_31 = arith.constant 0 : index
    %29 = vector.load %arg8[%c0_29, %c0_30, %c0_31] : memref<3x32x64xf32, #tpu.memory_space<vmem>>, vector<1x32x64xf32>
    %30 = vector.shape_cast %29 : vector<1x32x64xf32> to vector<32x64xf32>
    %c0_32 = arith.constant 0 : index
    %c0_33 = arith.constant 0 : index
    %31 = vector.load %arg11[%c0_32, %c0_33] : memref<64x128xf32, #tpu.memory_space<vmem>>, vector<64x128xf32>
    %cst_34 = arith.constant dense<0.000000e+00> : vector<32x128xf32>
    %32 = tpu.matmul %30, %31, %cst_34 {dimension_numbers = #tpu.dot_dimension_numbers<[1], [0], [0], [1], [0, 0, 1, 1], [], []>} : vector<32x64xf32>, vector<64x128xf32>, vector<32x128xf32> -> vector<32x128xf32>
    %33 = vector.broadcast %13 : vector<32x1xf32> to vector<32x128xf32>
    %34 = arith.addf %32, %33 : vector<32x128xf32>
    %c1 = arith.constant 1 : index
    %c0_35 = arith.constant 0 : index
    %c0_36 = arith.constant 0 : index
    %35 = vector.load %arg3[%c1, %c0_35, %c0_36] : memref<3x32x1xf32, #tpu.memory_space<vmem>>, vector<1x32x1xf32>
    %36 = vector.shape_cast %35 : vector<1x32x1xf32> to vector<32x1xf32>
    %c1_37 = arith.constant 1 : index
    %c0_38 = arith.constant 0 : index
    %c0_39 = arith.constant 0 : index
    %37 = vector.load %arg4[%c1_37, %c0_38, %c0_39] : memref<3x32x1xf32, #tpu.memory_space<vmem>>, vector<1x32x1xf32>
    %38 = vector.shape_cast %37 : vector<1x32x1xf32> to vector<32x1xf32>
    %c1_40 = arith.constant 1 : index
    %c0_41 = arith.constant 0 : index
    %c0_42 = arith.constant 0 : index
    %39 = vector.load %arg5[%c1_40, %c0_41, %c0_42] : memref<3x32x1xf32, #tpu.memory_space<vmem>>, vector<1x32x1xf32>
    %40 = vector.shape_cast %39 : vector<1x32x1xf32> to vector<32x1xf32>
    %c1_43 = arith.constant 1 : index
    %c0_44 = arith.constant 0 : index
    %c0_45 = arith.constant 0 : index
    %41 = vector.load %arg6[%c1_43, %c0_44, %c0_45] : memref<3x32x1xf32, #tpu.memory_space<vmem>>, vector<1x32x1xf32>
    %42 = vector.shape_cast %41 : vector<1x32x1xf32> to vector<32x1xf32>
    %43 = vector.broadcast %36 : vector<32x1xf32> to vector<32x128xf32>
    %44 = arith.mulf %34, %43 : vector<32x128xf32>
    %45 = vector.broadcast %38 : vector<32x1xf32> to vector<32x128xf32>
    %46 = arith.addf %44, %45 : vector<32x128xf32>
    %cst_46 = arith.constant 0.000000e+00 : f32
    %47 = vector.broadcast %cst_46 : f32 to vector<32x128xf32>
    %48 = arith.maximumf %46, %47 : vector<32x128xf32>
    %c1_47 = arith.constant 1 : index
    %c0_48 = arith.constant 0 : index
    %c0_49 = arith.constant 0 : index
    %49 = vector.load %arg7[%c1_47, %c0_48, %c0_49] : memref<3x32x32xf32, #tpu.memory_space<vmem>>, vector<1x32x32xf32>
    %50 = vector.shape_cast %49 : vector<1x32x32xf32> to vector<32x32xf32>
    %cst_50 = arith.constant dense<0.000000e+00> : vector<32x128xf32>
    %51 = tpu.matmul %50, %48, %cst_50 {dimension_numbers = #tpu.dot_dimension_numbers<[1], [0], [0], [1], [0, 0, 1, 1], [], []>} : vector<32x32xf32>, vector<32x128xf32>, vector<32x128xf32> -> vector<32x128xf32>
    %52 = vector.broadcast %40 : vector<32x1xf32> to vector<32x128xf32>
    %53 = arith.addf %51, %52 : vector<32x128xf32>
    %cst_51 = arith.constant 0.000000e+00 : f32
    %54 = vector.broadcast %cst_51 : f32 to vector<32x128xf32>
    %55 = arith.maximumf %53, %54 : vector<32x128xf32>
    %c0_52 = arith.constant 0 : index
    %c0_53 = arith.constant 0 : index
    %56 = vector.load %arg11[%c0_52, %c0_53] : memref<64x128xf32, #tpu.memory_space<vmem>>, vector<32x128xf32>
    tpu.vector_store %arg11[%c0_52, %c0_53], %55 {strides = array<i32>} : memref<64x128xf32, #tpu.memory_space<vmem>>, vector<32x128xf32>,
    %c32_54 = arith.constant 32 : index
    %c0_55 = arith.constant 0 : index
    %57 = vector.load %arg11[%c32_54, %c0_55] : memref<64x128xf32, #tpu.memory_space<vmem>>, vector<32x128xf32>
    tpu.vector_store %arg11[%c32_54, %c0_55], %34 {strides = array<i32>} : memref<64x128xf32, #tpu.memory_space<vmem>>, vector<32x128xf32>,
    %c1_56 = arith.constant 1 : index
    %c0_57 = arith.constant 0 : index
    %c0_58 = arith.constant 0 : index
    %58 = vector.load %arg8[%c1_56, %c0_57, %c0_58] : memref<3x32x64xf32, #tpu.memory_space<vmem>>, vector<1x32x64xf32>
    %59 = vector.shape_cast %58 : vector<1x32x64xf32> to vector<32x64xf32>
    %c0_59 = arith.constant 0 : index
    %c0_60 = arith.constant 0 : index
    %60 = vector.load %arg11[%c0_59, %c0_60] : memref<64x128xf32, #tpu.memory_space<vmem>>, vector<64x128xf32>
    %cst_61 = arith.constant dense<0.000000e+00> : vector<32x128xf32>
    %61 = tpu.matmul %59, %60, %cst_61 {dimension_numbers = #tpu.dot_dimension_numbers<[1], [0], [0], [1], [0, 0, 1, 1], [], []>} : vector<32x64xf32>, vector<64x128xf32>, vector<32x128xf32> -> vector<32x128xf32>
    %62 = vector.broadcast %42 : vector<32x1xf32> to vector<32x128xf32>
    %63 = arith.addf %61, %62 : vector<32x128xf32>
    %c2 = arith.constant 2 : index
    %c0_62 = arith.constant 0 : index
    %c0_63 = arith.constant 0 : index
    %64 = vector.load %arg3[%c2, %c0_62, %c0_63] : memref<3x32x1xf32, #tpu.memory_space<vmem>>, vector<1x32x1xf32>
    %65 = vector.shape_cast %64 : vector<1x32x1xf32> to vector<32x1xf32>
    %c2_64 = arith.constant 2 : index
    %c0_65 = arith.constant 0 : index
    %c0_66 = arith.constant 0 : index
    %66 = vector.load %arg4[%c2_64, %c0_65, %c0_66] : memref<3x32x1xf32, #tpu.memory_space<vmem>>, vector<1x32x1xf32>
    %67 = vector.shape_cast %66 : vector<1x32x1xf32> to vector<32x1xf32>
    %c2_67 = arith.constant 2 : index
    %c0_68 = arith.constant 0 : index
    %c0_69 = arith.constant 0 : index
    %68 = vector.load %arg5[%c2_67, %c0_68, %c0_69] : memref<3x32x1xf32, #tpu.memory_space<vmem>>, vector<1x32x1xf32>
    %69 = vector.shape_cast %68 : vector<1x32x1xf32> to vector<32x1xf32>
    %c2_70 = arith.constant 2 : index
    %c0_71 = arith.constant 0 : index
    %c0_72 = arith.constant 0 : index
    %70 = vector.load %arg6[%c2_70, %c0_71, %c0_72] : memref<3x32x1xf32, #tpu.memory_space<vmem>>, vector<1x32x1xf32>
    %71 = vector.shape_cast %70 : vector<1x32x1xf32> to vector<32x1xf32>
    %72 = vector.broadcast %65 : vector<32x1xf32> to vector<32x128xf32>
    %73 = arith.mulf %63, %72 : vector<32x128xf32>
    %74 = vector.broadcast %67 : vector<32x1xf32> to vector<32x128xf32>
    %75 = arith.addf %73, %74 : vector<32x128xf32>
    %cst_73 = arith.constant 0.000000e+00 : f32
    %76 = vector.broadcast %cst_73 : f32 to vector<32x128xf32>
    %77 = arith.maximumf %75, %76 : vector<32x128xf32>
    %c2_74 = arith.constant 2 : index
    %c0_75 = arith.constant 0 : index
    %c0_76 = arith.constant 0 : index
    %78 = vector.load %arg7[%c2_74, %c0_75, %c0_76] : memref<3x32x32xf32, #tpu.memory_space<vmem>>, vector<1x32x32xf32>
    %79 = vector.shape_cast %78 : vector<1x32x32xf32> to vector<32x32xf32>
    %cst_77 = arith.constant dense<0.000000e+00> : vector<32x128xf32>
    %80 = tpu.matmul %79, %77, %cst_77 {dimension_numbers = #tpu.dot_dimension_numbers<[1], [0], [0], [1], [0, 0, 1, 1], [], []>} : vector<32x32xf32>, vector<32x128xf32>, vector<32x128xf32> -> vector<32x128xf32>
    %81 = vector.broadcast %69 : vector<32x1xf32> to vector<32x128xf32>
    %82 = arith.addf %80, %81 : vector<32x128xf32>
    %cst_78 = arith.constant 0.000000e+00 : f32
    %83 = vector.broadcast %cst_78 : f32 to vector<32x128xf32>
    %84 = arith.maximumf %82, %83 : vector<32x128xf32>
    %c0_79 = arith.constant 0 : index
    %c0_80 = arith.constant 0 : index
    %85 = vector.load %arg11[%c0_79, %c0_80] : memref<64x128xf32, #tpu.memory_space<vmem>>, vector<32x128xf32>
    tpu.vector_store %arg11[%c0_79, %c0_80], %84 {strides = array<i32>} : memref<64x128xf32, #tpu.memory_space<vmem>>, vector<32x128xf32>,
    %c32_81 = arith.constant 32 : index
    %c0_82 = arith.constant 0 : index
    %86 = vector.load %arg11[%c32_81, %c0_82] : memref<64x128xf32, #tpu.memory_space<vmem>>, vector<32x128xf32>
    tpu.vector_store %arg11[%c32_81, %c0_82], %63 {strides = array<i32>} : memref<64x128xf32, #tpu.memory_space<vmem>>, vector<32x128xf32>,
    %c2_83 = arith.constant 2 : index
    %c0_84 = arith.constant 0 : index
    %c0_85 = arith.constant 0 : index
    %87 = vector.load %arg8[%c2_83, %c0_84, %c0_85] : memref<3x32x64xf32, #tpu.memory_space<vmem>>, vector<1x32x64xf32>
    %88 = vector.shape_cast %87 : vector<1x32x64xf32> to vector<32x64xf32>
    %c0_86 = arith.constant 0 : index
    %c0_87 = arith.constant 0 : index
    %89 = vector.load %arg11[%c0_86, %c0_87] : memref<64x128xf32, #tpu.memory_space<vmem>>, vector<64x128xf32>
    %cst_88 = arith.constant dense<0.000000e+00> : vector<32x128xf32>
    %90 = tpu.matmul %88, %89, %cst_88 {dimension_numbers = #tpu.dot_dimension_numbers<[1], [0], [0], [1], [0, 0, 1, 1], [], []>} : vector<32x64xf32>, vector<64x128xf32>, vector<32x128xf32> -> vector<32x128xf32>
    %91 = vector.broadcast %71 : vector<32x1xf32> to vector<32x128xf32>
    %92 = arith.addf %90, %91 : vector<32x128xf32>
    %c0_89 = arith.constant 0 : index
    %c0_90 = arith.constant 0 : index
    %c0_91 = arith.constant 0 : index
    %93 = vector.load %arg9[%c0_89, %c0_90, %c0_91] : memref<1x32x128xf32, #tpu.memory_space<vmem>>, vector<1x32x128xf32>
    %94 = vector.shape_cast %93 : vector<1x32x128xf32> to vector<32x128xf32>
    %95 = vector.shape_cast %92 : vector<32x128xf32> to vector<1x32x128xf32>
    tpu.vector_store %arg9[%c0_89, %c0_90, %c0_91], %95 {strides = array<i32>} : memref<1x32x128xf32, #tpu.memory_space<vmem>>, vector<1x32x128xf32>,
    return
  }
  func.func @transform_0(%arg0: i32, %arg1: i32) -> (i32, i32, i32) {
    %c0_i32 = arith.constant 0 : i32
    %c0_i32_0 = arith.constant 0 : i32
    return %arg0, %c0_i32, %arg1 : i32, i32, i32
  }
  func.func @transform_1(%arg0: i32, %arg1: i32) -> (i32, i32, i32) {
    %c0_i32 = arith.constant 0 : i32
    %c0_i32_0 = arith.constant 0 : i32
    %c0_i32_1 = arith.constant 0 : i32
    %c0_i32_2 = arith.constant 0 : i32
    return %c0_i32, %c0_i32_0, %c0_i32_1 : i32, i32, i32
  }
  func.func @transform_2(%arg0: i32, %arg1: i32) -> (i32, i32, i32) {
    %c0_i32 = arith.constant 0 : i32
    %c0_i32_0 = arith.constant 0 : i32
    %c0_i32_1 = arith.constant 0 : i32
    %c0_i32_2 = arith.constant 0 : i32
    return %c0_i32, %c0_i32_0, %c0_i32_1 : i32, i32, i32
  }
  func.func @transform_3(%arg0: i32, %arg1: i32) -> (i32, i32, i32) {
    %c0_i32 = arith.constant 0 : i32
    %c0_i32_0 = arith.constant 0 : i32
    %c0_i32_1 = arith.constant 0 : i32
    %c0_i32_2 = arith.constant 0 : i32
    return %c0_i32, %c0_i32_0, %c0_i32_1 : i32, i32, i32
  }
  func.func @transform_4(%arg0: i32, %arg1: i32) -> (i32, i32, i32) {
    %c0_i32 = arith.constant 0 : i32
    %c0_i32_0 = arith.constant 0 : i32
    %c0_i32_1 = arith.constant 0 : i32
    %c0_i32_2 = arith.constant 0 : i32
    return %c0_i32, %c0_i32_0, %c0_i32_1 : i32, i32, i32
  }
  func.func @transform_5(%arg0: i32, %arg1: i32) -> (i32, i32, i32) {
    %c0_i32 = arith.constant 0 : i32
    %c0_i32_0 = arith.constant 0 : i32
    %c0_i32_1 = arith.constant 0 : i32
    %c0_i32_2 = arith.constant 0 : i32
    return %c0_i32, %c0_i32_0, %c0_i32_1 : i32, i32, i32
  }
  func.func @transform_6(%arg0: i32, %arg1: i32) -> (i32, i32, i32) {
    %c0_i32 = arith.constant 0 : i32
    %c0_i32_0 = arith.constant 0 : i32
    %c0_i32_1 = arith.constant 0 : i32
    %c0_i32_2 = arith.constant 0 : i32
    return %c0_i32, %c0_i32_0, %c0_i32_1 : i32, i32, i32
  }
  func.func @transform_7(%arg0: i32, %arg1: i32) -> (i32, i32, i32) {
    %c0_i32 = arith.constant 0 : i32
    %c0_i32_0 = arith.constant 0 : i32
    return %arg0, %c0_i32, %arg1 : i32, i32, i32
  }
}

</mosaic_0001>

<llo_original>
// kernel: feature_generator_forward.1
$region0: #{feature_generator_forward.1}
  #allocation0 [shape = 'u32[]', space=smem, size = 0x4, offset = 0x4, fixed_abs, tag = 'smem constant byte address 0x4 - core index']
  #allocation1 [shape = 'u32[144,128]{1,0:T(1,128)}', space=vmem, size = 0x12000, scoped, tag = 'internal scratch']
  #allocation2 [shape = 'f32[32,128]{1,0:T(8,128)}', space=vmem, size = 0x4000, scoped, tag = 'scratch operand']
  #allocation3 [shape = 'f32[64,128]{1,0:T(8,128)}', space=vmem, size = 0x8000, scoped, tag = 'scratch operand']
  %s0 = inlined_call_operand.vmem [shape: f32[2,4,128], index: 0, kind: input, shape index: {}]
  %s1 = inlined_call_operand.vmem [shape: f32[3,32,1], index: 1, kind: input, shape index: {}]
  %s2 = inlined_call_operand.vmem [shape: f32[3,32,1], index: 2, kind: input, shape index: {}]
  %s3 = inlined_call_operand.vmem [shape: f32[3,32,1], index: 3, kind: input, shape index: {}]
  %s4 = inlined_call_operand.vmem [shape: f32[3,32,1], index: 4, kind: input, shape index: {}]
  %s5 = inlined_call_operand.vmem [shape: f32[3,32,32], index: 5, kind: input, shape index: {}]
  %s6 = inlined_call_operand.vmem [shape: f32[3,32,64], index: 6, kind: input, shape index: {}]
  %s7 = inlined_call_operand.vmem [shape: f32[2,32,128], index: 7, kind: output, shape index: {}]
  %s8 = sld [smem:[#allocation0]]
  $region61: #{feature_generator_forward.1} parent=0
    _
  %s10 = ssub.s32 1, %s8
  %s11 = scalar_select 0, %s10, %s8
  loop: start=0, step=1, limit=4
  $region2: #{feature_generator_forward.1} parent=0 // loop_pre_header
    _
  $region3: #{feature_generator_forward.1} parent=0 // loop_header
    %s13 = sphi 0, %s17
    %p14 = scmp.ge.s32.totalorder %s13, 4
    %s20 = sphi 0, %s32
    %s21 = sphi 0, %s28
    %s22 = sphi 0, %s20
    %s23 = sphi 0, %s21
    %s24 = sphi 0, %s22
    %s25 = sphi 0, %s23
    %s37 = sphi 0, %s39
    %s40 = sphi 0, %s37
    %s41 = sphi 0, %s40
    %s57 = sphi 0, %s41
    %s61 = sphi 0, %s61
    %s63 = sphi 0, %s61
    %s64 = sphi 0, %s63
    %s78 = sphi 0, %s64
    %s82 = sphi 0, %s82
    %s84 = sphi 0, %s82
    %s85 = sphi 0, %s84
    %s99 = sphi 0, %s85
    %s103 = sphi 0, %s103
    %s105 = sphi 0, %s103
    %s106 = sphi 0, %s105
    %s120 = sphi 0, %s106
    %s124 = sphi 0, %s124
    %s126 = sphi 0, %s124
    %s127 = sphi 0, %s126
    %s141 = sphi 0, %s127
    %s145 = sphi 0, %s145
    %s147 = sphi 0, %s145
    %s148 = sphi 0, %s147
    %s162 = sphi 0, %s148
    %s166 = sphi 0, %s166
    %s168 = sphi 0, %s166
    %s169 = sphi 0, %s168
    %s183 = sphi 0, %s169
    %s191 = sphi 0, %s193
    %s194 = sphi 0, %s191
    %s195 = sphi 0, %s194
    %s211 = sphi 0, %s195
  $region4: #{feature_generator_forward.1} parent=0 // loop_header_branch
    %16 = sbr.rel (%p14) target = $region8
  $region5: #{feature_generator_forward.1} parent=0 // loop_body
    %s18 = ssub.s32 %s13, 1
    %s19 = ssub.s32 %s13, 2
    %s26 = sadd.s32 1, %s21
    %p27 = scmp.ge.s32.totalorder %s26, 1
    %s28 = scalar_select %p27, 0, %s26
    %s29 = sadd.s32 1, %s20
    %s30 = scalar_select %p27, %s29, %s20
    %p31 = scmp.ge.s32.totalorder %s30, 2
    %s32 = scalar_select %p31, 0, %s30
    %s33 = ssub.s32 %s20, %s32
    %s34 = ssub.s32 %s21, %s28
    %s35 = sor.u32 %s33, %s34
    %p36 = scmp.eq.s32.totalorder %s35, 0
    %s38 = sadd.s32 %s37, 1
    %s39 = scalar_select %p36, %s37, %s38
    %p42 = pneg %p36
    %p43 = scmp.eq.s32.totalorder %s13, 1
    %p44 = por %p42, %p43
    %p45 = scmp.ne.s32.totalorder %s37, %s40
    %p46 = scmp.eq.s32.totalorder %s13, 0
    %p47 = por %p45, %p46
    %p48 = scmp.ne.s32.totalorder %s37, %s40
    %p49 = scmp.eq.s32.totalorder %s18, 1
    %p50 = por %p48, %p49
    %p51 = scmp.ne.s32.totalorder %s40, %s41
    %p52 = scmp.eq.s32.totalorder %s18, 0
    %p53 = por %p51, %p52
    %p54 = scmp.ne.s32.totalorder %s40, %s41
    %p55 = scmp.eq.s32.totalorder %s19, 1
    %p56 = por %p54, %p55
    %p58 = scmp.ne.s32.totalorder %s41, %s57
    %p59 = scmp.eq.s32.totalorder %s19, 0
    %p60 = por %p58, %p59
    %s62 = sadd.s32 %s61, 1
    %p65 = scmp.eq.s32.totalorder %s13, 1
    %p66 = scmp.ne.s32.totalorder %s61, %s63
    %p67 = scmp.eq.s32.totalorder %s13, 0
    %p68 = por %p66, %p67
    %p69 = scmp.ne.s32.totalorder %s61, %s63
    %p70 = scmp.eq.s32.totalorder %s18, 1
    %p71 = por %p69, %p70
    %p72 = scmp.ne.s32.totalorder %s63, %s64
    %p73 = scmp.eq.s32.totalorder %s18, 0
    %p74 = por %p72, %p73
    %p75 = scmp.ne.s32.totalorder %s63, %s64
    %p76 = scmp.eq.s32.totalorder %s19, 1
    %p77 = por %p75, %p76
    %p79 = scmp.ne.s32.totalorder %s64, %s78
    %p80 = scmp.eq.s32.totalorder %s19, 0
    %p81 = por %p79, %p80
    %s83 = sadd.s32 %s82, 1
    %p86 = scmp.eq.s32.totalorder %s13, 1
    %p87 = scmp.ne.s32.totalorder %s82, %s84
    %p88 = scmp.eq.s32.totalorder %s13, 0
    %p89 = por %p87, %p88
    %p90 = scmp.ne.s32.totalorder %s82, %s84
    %p91 = scmp.eq.s32.totalorder %s18, 1
    %p92 = por %p90, %p91
    %p93 = scmp.ne.s32.totalorder %s84, %s85
    %p94 = scmp.eq.s32.totalorder %s18, 0
    %p95 = por %p93, %p94
    %p96 = scmp.ne.s32.totalorder %s84, %s85
    %p97 = scmp.eq.s32.totalorder %s19, 1
    %p98 = por %p96, %p97
    %p100 = scmp.ne.s32.totalorder %s85, %s99
    %p101 = scmp.eq.s32.totalorder %s19, 0
    %p102 = por %p100, %p101
    %s104 = sadd.s32 %s103, 1
    %p107 = scmp.eq.s32.totalorder %s13, 1
    %p108 = scmp.ne.s32.totalorder %s103, %s105
    %p109 = scmp.eq.s32.totalorder %s13, 0
    %p110 = por %p108, %p109
    %p111 = scmp.ne.s32.totalorder %s103, %s105
    %p112 = scmp.eq.s32.totalorder %s18, 1
    %p113 = por %p111, %p112
    %p114 = scmp.ne.s32.totalorder %s105, %s106
    %p115 = scmp.eq.s32.totalorder %s18, 0
    %p116 = por %p114, %p115
    %p117 = scmp.ne.s32.totalorder %s105, %s106
    %p118 = scmp.eq.s32.totalorder %s19, 1
    %p119 = por %p117, %p118
    %p121 = scmp.ne.s32.totalorder %s106, %s120
    %p122 = scmp.eq.s32.totalorder %s19, 0
    %p123 = por %p121, %p122
    %s125 = sadd.s32 %s124, 1
    %p128 = scmp.eq.s32.totalorder %s13, 1
    %p129 = scmp.ne.s32.totalorder %s124, %s126
    %p130 = scmp.eq.s32.totalorder %s13, 0
    %p131 = por %p129, %p130
    %p132 = scmp.ne.s32.totalorder %s124, %s126
    %p133 = scmp.eq.s32.totalorder %s18, 1
    %p134 = por %p132, %p133
    %p135 = scmp.ne.s32.totalorder %s126, %s127
    %p136 = scmp.eq.s32.totalorder %s18, 0
    %p137 = por %p135, %p136
    %p138 = scmp.ne.s32.totalorder %s126, %s127
    %p139 = scmp.eq.s32.totalorder %s19, 1
    %p140 = por %p138, %p139
    %p142 = scmp.ne.s32.totalorder %s127, %s141
    %p143 = scmp.eq.s32.totalorder %s19, 0
    %p144 = por %p142, %p143
    %s146 = sadd.s32 %s145, 1
    %p149 = scmp.eq.s32.totalorder %s13, 1
    %p150 = scmp.ne.s32.totalorder %s145, %s147
    %p151 = scmp.eq.s32.totalorder %s13, 0
    %p152 = por %p150, %p151
    %p153 = scmp.ne.s32.totalorder %s145, %s147
    %p154 = scmp.eq.s32.totalorder %s18, 1
    %p155 = por %p153, %p154
    %p156 = scmp.ne.s32.totalorder %s147, %s148
    %p157 = scmp.eq.s32.totalorder %s18, 0
    %p158 = por %p156, %p157
    %p159 = scmp.ne.s32.totalorder %s147, %s148
    %p160 = scmp.eq.s32.totalorder %s19, 1
    %p161 = por %p159, %p160
    %p163 = scmp.ne.s32.totalorder %s148, %s162
    %p164 = scmp.eq.s32.totalorder %s19, 0
    %p165 = por %p163, %p164
    %s167 = sadd.s32 %s166, 1
    %p170 = scmp.eq.s32.totalorder %s13, 1
    %p171 = scmp.ne.s32.totalorder %s166, %s168
    %p172 = scmp.eq.s32.totalorder %s13, 0
    %p173 = por %p171, %p172
    %p174 = scmp.ne.s32.totalorder %s166, %s168
    %p175 = scmp.eq.s32.totalorder %s18, 1
    %p176 = por %p174, %p175
    %p177 = scmp.ne.s32.totalorder %s168, %s169
    %p178 = scmp.eq.s32.totalorder %s18, 0
    %p179 = por %p177, %p178
    %p180 = scmp.ne.s32.totalorder %s168, %s169
    %p181 = scmp.eq.s32.totalorder %s19, 1
    %p182 = por %p180, %p181
    %p184 = scmp.ne.s32.totalorder %s169, %s183
    %p185 = scmp.eq.s32.totalorder %s19, 0
    %p186 = por %p184, %p185
    %s187 = ssub.s32 %s20, %s32
    %s188 = ssub.s32 %s21, %s28
    %s189 = sor.u32 %s187, %s188
    %p190 = scmp.eq.s32.totalorder %s189, 0
    %s192 = sadd.s32 %s191, 1
    %s193 = scalar_select %p190, %s191, %s192
    %p196 = pneg %p190
    %p197 = scmp.eq.s32.totalorder %s13, 1
    %p198 = por %p196, %p197
    %p199 = scmp.ne.s32.totalorder %s191, %s194
    %p200 = scmp.eq.s32.totalorder %s13, 0
    %p201 = por %p199, %p200
    %p202 = scmp.ne.s32.totalorder %s191, %s194
    %p203 = scmp.eq.s32.totalorder %s18, 1
    %p204 = por %p202, %p203
    %p205 = scmp.ne.s32.totalorder %s194, %s195
    %p206 = scmp.eq.s32.totalorder %s18, 0
    %p207 = por %p205, %p206
    %p208 = scmp.ne.s32.totalorder %s194, %s195
    %p209 = scmp.eq.s32.totalorder %s19, 1
    %p210 = por %p208, %p209
    %p212 = scmp.ne.s32.totalorder %s195, %s211
    %p213 = scmp.eq.s32.totalorder %s19, 0
    %p214 = por %p212, %p213
    %p215 = scmp.le.s32.totalorder 1, %s13
    %p216 = scmp.lt.s32.totalorder %s13, 3
    %p217 = pnand %p215, %p216
    %p218 = pneg %p217
    // Predicated region
    $region9: #{feature_generator_forward.1} parent=5 // pred_check
      _
    $region10: #{feature_generator_forward.1} parent=5 // pred_check_branch
      %220 = sbr.rel (%p217) target = $region12
    $region11: #{feature_generator_forward.1} parent=5 // pred_region
      %s221 = ssub.s32 %s13, 1
      // Predicated region
      $region13: #{feature_generator_forward.1} parent=11 // pred_check
        %p222 = pneg %p74
      $region14: #{feature_generator_forward.1} parent=11 // pred_check_branch
        %224 = sbr.rel (%p222) target = $region16
      $region15: #{feature_generator_forward.1} parent=11 // pred_region
        _
      $region16: #{feature_generator_forward.1} parent=11 // pred_fallthru
        _
      // Predicated region
      $region17: #{feature_generator_forward.1} parent=11 // pred_check
        %p225 = pneg %p95
      $region18: #{feature_generator_forward.1} parent=11 // pred_check_branch
        %227 = sbr.rel (%p225) target = $region20
      $region19: #{feature_generator_forward.1} parent=11 // pred_region
        _
      $region20: #{feature_generator_forward.1} parent=11 // pred_fallthru
        _
      // Predicated region
      $region21: #{feature_generator_forward.1} parent=11 // pred_check
        %p228 = pneg %p116
      $region22: #{feature_generator_forward.1} parent=11 // pred_check_branch
        %230 = sbr.rel (%p228) target = $region24
      $region23: #{feature_generator_forward.1} parent=11 // pred_region
        _
      $region24: #{feature_generator_forward.1} parent=11 // pred_fallthru
        _
      // Predicated region
      $region25: #{feature_generator_forward.1} parent=11 // pred_check
        %p231 = pneg %p137
      $region26: #{feature_generator_forward.1} parent=11 // pred_check_branch
        %233 = sbr.rel (%p231) target = $region28
      $region27: #{feature_generator_forward.1} parent=11 // pred_region
        _
      $region28: #{feature_generator_forward.1} parent=11 // pred_fallthru
        _
      // Predicated region
      $region29: #{feature_generator_forward.1} parent=11 // pred_check
        %p234 = pneg %p158
      $region30: #{feature_generator_forward.1} parent=11 // pred_check_branch
        %236 = sbr.rel (%p234) target = $region32
      $region31: #{feature_generator_forward.1} parent=11 // pred_region
        _
      $region32: #{feature_generator_forward.1} parent=11 // pred_fallthru
        _
      // Predicated region
      $region33: #{feature_generator_forward.1} parent=11 // pred_check
        %p237 = pneg %p179
      $region34: #{feature_generator_forward.1} parent=11 // pred_check_branch
        %239 = sbr.rel (%p237) target = $region36
      $region35: #{feature_generator_forward.1} parent=11 // pred_region
        _
      $region36: #{feature_generator_forward.1} parent=11 // pred_fallthru
        _
    $region12: #{feature_generator_forward.1} parent=5 // pred_fallthru
      _
    %p240 = scmp.lt.s32.totalorder %s13, 2
    // Predicated region
    $region37: #{feature_generator_forward.1} parent=5 // pred_check
      %p241 = pneg %p240
    $region38: #{feature_generator_forward.1} parent=5 // pred_check_branch
      %243 = sbr.rel (%p241) target = $region40
    $region39: #{feature_generator_forward.1} parent=5 // pred_region
      // Predicated region
      $region41: #{feature_generator_forward.1} parent=39 // pred_check
        %p244 = pneg %p47
      $region42: #{feature_generator_forward.1} parent=39 // pred_check_branch
        %246 = sbr.rel (%p244) target = $region44
      $region43: #{feature_generator_forward.1} parent=39 // pred_region
        %p247 = scmp.lt.s32.totalorder %s20, 1
        %s248 = scalar_select %p247, %s20, 1
        %p249 = scmp.lt.s32.totalorder %s21, 0
        %s250 = scalar_select %p249, %s21, 0
        %s251 = sadd.s32 %s250, %s248
        %s252 = smul.addr %s251, 4
        %s253 = scalar_lea.vmem %s0, %s252
      $region44: #{feature_generator_forward.1} parent=39 // pred_fallthru
        _
    $region40: #{feature_generator_forward.1} parent=5 // pred_fallthru
      _
    %p254 = scmp.le.s32.totalorder 1, %s13
    %p255 = scmp.lt.s32.totalorder %s13, 3
    %p256 = pnand %p254, %p255
    %p257 = pneg %p256
    // Predicated region
    $region45: #{feature_generator_forward.1} parent=5 // pred_check
      _
    $region46: #{feature_generator_forward.1} parent=5 // pred_check_branch
      %259 = sbr.rel (%p256) target = $region48
    $region47: #{feature_generator_forward.1} parent=5 // pred_region
      %s260 = ssub.s32 %s13, 1
      %p261 = scmp.lt.s32.totalorder %s22, 1
      %s262 = scalar_select %p261, %s22, 1
      %p263 = scmp.lt.s32.totalorder %s23, 0
      %s264 = scalar_select %p263, %s23, 0
      %s265 = sadd.s32 %s264, %s262
      %s266 = smul.addr %s265, 4
      %s267 = scalar_lea.vmem %s0, %s266
      %p268 = pneg %p53
      %p269 = pneg %p50
      %p270 = pneg %p74
      %p271 = pneg %p71
      %p272 = pneg %p95
      %p273 = pneg %p92
      %p274 = pneg %p116
      %p275 = pneg %p113
      %p276 = pneg %p137
      %p277 = pneg %p134
      %p278 = pneg %p158
      %p279 = pneg %p155
      %p280 = pneg %p179
      %p281 = pneg %p176
      %p282 = pneg %p207
      %p283 = pneg %p204
      %p284 = scmp.lt.s32.totalorder %s22, 1
      %s285 = scalar_select %p284, %s22, 1
      %p286 = scmp.lt.s32.totalorder %s23, 0
      %s287 = scalar_select %p286, %s23, 0
      %s288 = smul.addr %s285, 4
      %s289 = sadd.s32 %s287, %s288
      %s290 = smul.addr %s289, 8
      %s291 = scalar_lea.vmem %s7, %s290
      %p292 = scmp.lt.s32.totalorder %s22, 1
      %s293 = scalar_select %p292, %s22, 1
      %p294 = scmp.lt.s32.totalorder %s23, 0
      %s295 = scalar_select %p294, %s23, 0
      %s296 = sadd.s32 %s295, %s293
      %s297 = smul.addr %s296, 4
      %s298 = scalar_lea.vmem %s0, %s297
      %p299 = scmp.lt.s32.totalorder %s22, 1
      %s300 = scalar_select %p299, %s22, 1
      %p301 = scmp.lt.s32.totalorder %s23, 0
      %s302 = scalar_select %p301, %s23, 0
      %s303 = smul.addr %s300, 4
      %s304 = sadd.s32 %s302, %s303
      %s305 = smul.addr %s304, 8
      %s306 = scalar_lea.vmem %s7, %s305
      %307 = vst [vmem:[#allocation2] sm:$0xff] 0.0
      %308 = vst [vmem:[#allocation2 + $0x8] sm:$0xff] 0.0
      %309 = vst [vmem:[#allocation2 + $0x10] sm:$0xff] 0.0
      %310 = vst [vmem:[#allocation2 + $0x18] sm:$0xff] 0.0
      %v311 = vld [vmem:[%s298] sm:$0xf]
      %312 = vst [vmem:[#allocation2] sm:$0xf] %v311
      %v313 = vld [vmem:[#allocation2] sm:$0xff]
      %v314 = vld [vmem:[#allocation2 + $0x8] sm:$0xff]
      %v315 = vld [vmem:[#allocation2 + $0x10] sm:$0xff]
      %v316 = vld [vmem:[#allocation2 + $0x18] sm:$0xff]
      %v317 = vld [vmem:[%s1] sm:$0xff]
      %v318 = vld [vmem:[%s1 + $0x8] sm:$0xff]
      %v319 = vld [vmem:[%s1 + $0x10] sm:$0xff]
      %v320 = vld [vmem:[%s1 + $0x18] sm:$0xff]
      %v321 = vld [vmem:[%s2] sm:$0xff]
      %v322 = vld [vmem:[%s2 + $0x8] sm:$0xff]
      %v323 = vld [vmem:[%s2 + $0x10] sm:$0xff]
      %v324 = vld [vmem:[%s2 + $0x18] sm:$0xff]
      %v325 = vld [vmem:[%s3] sm:$0xff]
      %v326 = vld [vmem:[%s3 + $0x8] sm:$0xff]
      %v327 = vld [vmem:[%s3 + $0x10] sm:$0xff]
      %v328 = vld [vmem:[%s3 + $0x18] sm:$0xff]
      %v329 = vld [vmem:[%s4] sm:$0xff]
      %v330 = vld [vmem:[%s4 + $0x8] sm:$0xff]
      %v331 = vld [vmem:[%s4 + $0x10] sm:$0xff]
      %v332 = vld [vmem:[%s4 + $0x18] sm:$0xff]
      %334 = vset.pattern.permute.xlu0 0
      %335 = vperm.xlu0 %334, %v317
      %v336 = vpop.permute.xlu0 %335
      %339 = vset.pattern.permute.xlu0 0
      %340 = vperm.xlu0 %339, %v318
      %v341 = vpop.permute.xlu0 %340
      %344 = vset.pattern.permute.xlu0 0
      %345 = vperm.xlu0 %344, %v319
      %v346 = vpop.permute.xlu0 %345
      %349 = vset.pattern.permute.xlu0 0
      %350 = vperm.xlu0 %349, %v320
      %v351 = vpop.permute.xlu0 %350
      %v353 = vmul.f32 %v313, %v336
      %v354 = vmul.f32 %v314, %v341
      %v355 = vmul.f32 %v315, %v346
      %v356 = vmul.f32 %v316, %v351
      %358 = vset.pattern.permute.xlu0 0
      %359 = vperm.xlu0 %358, %v321
      %v360 = vpop.permute.xlu0 %359
      %363 = vset.pattern.permute.xlu0 0
      %364 = vperm.xlu0 %363, %v322
      %v365 = vpop.permute.xlu0 %364
      %368 = vset.pattern.permute.xlu0 0
      %369 = vperm.xlu0 %368, %v323
      %v370 = vpop.permute.xlu0 %369
      %373 = vset.pattern.permute.xlu0 0
      %374 = vperm.xlu0 %373, %v324
      %v375 = vpop.permute.xlu0 %374
      %v377 = vadd.f32 %v353, %v360
      %v378 = vadd.f32 %v354, %v365
      %v379 = vadd.f32 %v355, %v370
      %v380 = vadd.f32 %v356, %v375
      %v381 = vmax.f32 %v377, 0.0
      %v382 = vmax.f32 %v378, 0.0
      %v383 = vmax.f32 %v379, 0.0
      %v384 = vmax.f32 %v380, 0.0
      %v385 = vld [vmem:[%s5] sm:$0xff]
      %v386 = vld [vmem:[%s5 + $0x8] sm:$0xff]
      %v387 = vld [vmem:[%s5 + $0x10] sm:$0xff]
      %v388 = vld [vmem:[%s5 + $0x18] sm:$0xff]
      %390 = vset.pattern.permute.xlu0 0
      %391 = vperm.xlu0 %390, %v325
      %v392 = vpop.permute.xlu0 %391
      %395 = vset.pattern.permute.xlu0 0
      %396 = vperm.xlu0 %395, %v326
      %v397 = vpop.permute.xlu0 %396
      %400 = vset.pattern.permute.xlu0 0
      %401 = vperm.xlu0 %400, %v327
      %v402 = vpop.permute.xlu0 %401
      %405 = vset.pattern.permute.xlu0 0
      %406 = vperm.xlu0 %405, %v328
      %v407 = vpop.permute.xlu0 %406
      %vm409 = vcmask 261120
      %v411 = vsel %vm409, %v385, 0
      %v414 = vsel %vm409, %v386, 0
      %v417 = vsel %vm409, %v387, 0
      %v420 = vsel %vm409, %v388, 0
      %422 = vmatprep.subr.mxu0 0.0
      %423 = vmatpush1.msra.mxu0 %v381
      %424 = vmatprep.subr.mxu0 0.0
      %425 = vmatpush1.msra.mxu0 %v382
      %426 = vmatprep.subr.mxu0 0.0
      %427 = vmatpush1.msra.mxu0 %v383
      %428 = vmatprep.subr.mxu0 0.0
      %429 = vmatpush1.msra.mxu0 %v384
      %430 = vmatprep.subr.mxu0 0.0
      %431 = vmatpush1.msra.mxu0 0.0
      %432 = vmatprep.subr.mxu0 0.0
      %433 = vmatpush1.msra.mxu0 0.0
      %434 = vmatprep.subr.mxu0 0.0
      %435 = vmatpush1.msra.mxu0 0.0
      %436 = vmatprep.subr.mxu0 0.0
      %437 = vmatpush1.msra.mxu0 0.0
      %438 = vmatprep.subr.mxu0 0.0
      %439 = vmatpush1.msra.mxu0 0.0
      %440 = vmatprep.subr.mxu0 0.0
      %441 = vmatpush1.msra.mxu0 0.0
      %442 = vmatprep.subr.mxu0 0.0
      %443 = vmatpush1.msra.mxu0 0.0
      %444 = vmatprep.subr.mxu0 0.0
      %445 = vmatpush1.msra.mxu0 0.0
      %446 = vmatprep.subr.mxu0 0.0
      %447 = vmatpush1.msra.mxu0 0.0
      %448 = vmatprep.subr.mxu0 0.0
      %449 = vmatpush1.msra.mxu0 0.0
      %450 = vmatprep.subr.mxu0 0.0
      %451 = vmatpush1.msra.mxu0 0.0
      %452 = vmatprep.subr.mxu0 0.0
      %453 = vmatpush1.msra.mxu0 0.0
      %454 = vmatprep.subr.mxu0 0.0
      %455 = vmatpush1.msra.mxu0 0.0
      %456 = vmatprep.subr.mxu0 0.0
      %457 = vmatpush1.msra.mxu0 0.0
      %458 = vmatprep.subr.mxu0 0.0
      %459 = vmatpush1.msra.mxu0 0.0
      %460 = vmatprep.subr.mxu0 0.0
      %461 = vmatpush1.msra.mxu0 0.0
      %462 = vmatprep.subr.mxu0 0.0
      %463 = vmatpush1.msra.mxu0 0.0
      %464 = vmatprep.subr.mxu0 0.0
      %465 = vmatpush1.msra.mxu0 0.0
      %466 = vmatprep.subr.mxu0 0.0
      %467 = vmatpush1.msra.mxu0 0.0
      %468 = vmatprep.subr.mxu0 0.0
      %469 = vmatpush1.msra.mxu0 0.0
      %470 = vmatprep.subr.mxu0 0.0
      %471 = vmatpush1.msra.mxu0 0.0
      %472 = vmatprep.subr.mxu0 0.0
      %473 = vmatpush1.msra.mxu0 0.0
      %474 = vmatprep.subr.mxu0 0.0
      %475 = vmatpush1.msra.mxu0 0.0
      %476 = vmatprep.subr.mxu0 0.0
      %477 = vmatpush1.msra.mxu0 0.0
      %478 = vmatprep.subr.mxu0 0.0
      %479 = vmatpush1.msra.mxu0 0.0
      %480 = vmatprep.subr.mxu0 0.0
      %481 = vmatpush1.msra.mxu0 0.0
      %482 = vmatprep.subr.mxu0 0.0
      %483 = vmatpush1.msra.mxu0 0.0
      %484 = vmatprep.subr.mxu0 0.0
      %485 = vmatpush1.msra.mxu0 0.0
      %486 = vmatprep.mubr.f32.mxu0 0.0
      %487 = vmatmul.mubr.f32.gmra.mrb[0].mxu0 %v411
      %v488 = vpop.f32.mrb[0].mxu0
      %v489 = vadd.f32 %v392, %v488
      %v490 = vpop.f32.mrb[0].mxu0
      %491 = vmatprep.mubr.f32.mxu0 0.0
      %492 = vmatmul.mubr.f32.gmra.mrb[0].mxu0 %v414
      %v493 = vpop.f32.mrb[0].mxu0
      %v494 = vadd.f32 %v397, %v493
      %v495 = vpop.f32.mrb[0].mxu0
      %496 = vmatprep.mubr.f32.mxu0 0.0
      %497 = vmatmul.mubr.f32.gmra.mrb[0].mxu0 %v417
      %v498 = vpop.f32.mrb[0].mxu0
      %v499 = vadd.f32 %v402, %v498
      %v500 = vpop.f32.mrb[0].mxu0
      %501 = vmatprep.mubr.f32.mxu0 0.0
      %502 = vmatmul.mubr.f32.gmra.mrb[0].mxu0 %v420
      %v503 = vpop.f32.mrb[0].mxu0
      %v504 = vadd.f32 %v407, %v503
      %v505 = vpop.f32.mrb[0].mxu0
      %506 = vdwg.mxu0
      %v507 = vmax.f32 %v489, 0.0
      %v508 = vmax.f32 %v494, 0.0
      %v509 = vmax.f32 %v499, 0.0
      %v510 = vmax.f32 %v504, 0.0
      %511 = vst [vmem:[#allocation3] sm:$0xff] %v507
      %512 = vst [vmem:[#allocation3 + $0x8] sm:$0xff] %v508
      %513 = vst [vmem:[#allocation3 + $0x10] sm:$0xff] %v509
      %514 = vst [vmem:[#allocation3 + $0x18] sm:$0xff] %v510
      %515 = vst [vmem:[#allocation3 + $0x20] sm:$0xff] %v313
      %516 = vst [vmem:[#allocation3 + $0x28] sm:$0xff] %v314
      %517 = vst [vmem:[#allocation3 + $0x30] sm:$0xff] %v315
      %518 = vst [vmem:[#allocation3 + $0x38] sm:$0xff] %v316
      %v519 = vld [vmem:[%s6] sm:$0xff]
      %v520 = vld [vmem:[%s6 + $0x8] sm:$0xff]
      %v521 = vld [vmem:[%s6 + $0x10] sm:$0xff]
      %v522 = vld [vmem:[%s6 + $0x18] sm:$0xff]
      %v523 = vld [vmem:[#allocation3] sm:$0xff]
      %v524 = vld [vmem:[#allocation3 + $0x8] sm:$0xff]
      %v525 = vld [vmem:[#allocation3 + $0x10] sm:$0xff]
      %v526 = vld [vmem:[#allocation3 + $0x18] sm:$0xff]
      %v527 = vld [vmem:[#allocation3 + $0x20] sm:$0xff]
      %v528 = vld [vmem:[#allocation3 + $0x28] sm:$0xff]
      %v529 = vld [vmem:[#allocation3 + $0x30] sm:$0xff]
      %v530 = vld [vmem:[#allocation3 + $0x38] sm:$0xff]
      %532 = vset.pattern.permute.xlu0 0
      %533 = vperm.xlu0 %532, %v329
      %v534 = vpop.permute.xlu0 %533
      %537 = vset.pattern.permute.xlu0 0
      %538 = vperm.xlu0 %537, %v330
      %v539 = vpop.permute.xlu0 %538
      %542 = vset.pattern.permute.xlu0 0
      %543 = vperm.xlu0 %542, %v331
      %v544 = vpop.permute.xlu0 %543
      %547 = vset.pattern.permute.xlu0 0
      %548 = vperm.xlu0 %547, %v332
      %v549 = vpop.permute.xlu0 %548
      %vm551 = vcmask 523264
      %v553 = vsel %vm551, %v519, 0
      %v556 = vsel %vm551, %v520, 0
      %v559 = vsel %vm551, %v521, 0
      %v562 = vsel %vm551, %v522, 0
      %564 = vmatprep.subr.mxu0 0.0
      %565 = vmatpush1.msra.mxu0 %v523
      %566 = vmatprep.subr.mxu0 0.0
      %567 = vmatpush1.msra.mxu0 %v524
      %568 = vmatprep.subr.mxu0 0.0
      %569 = vmatpush1.msra.mxu0 %v525
      %570 = vmatprep.subr.mxu0 0.0
      %571 = vmatpush1.msra.mxu0 %v526
      %572 = vmatprep.subr.mxu0 0.0
      %573 = vmatpush1.msra.mxu0 %v527
      %574 = vmatprep.subr.mxu0 0.0
      %575 = vmatpush1.msra.mxu0 %v528
      %576 = vmatprep.subr.mxu0 0.0
      %577 = vmatpush1.msra.mxu0 %v529
      %578 = vmatprep.subr.mxu0 0.0
      %579 = vmatpush1.msra.mxu0 %v530
      %580 = vmatprep.subr.mxu0 0.0
      %581 = vmatpush1.msra.mxu0 0.0
      %582 = vmatprep.subr.mxu0 0.0
      %583 = vmatpush1.msra.mxu0 0.0
      %584 = vmatprep.subr.mxu0 0.0
      %585 = vmatpush1.msra.mxu0 0.0
      %586 = vmatprep.subr.mxu0 0.0
      %587 = vmatpush1.msra.mxu0 0.0
      %588 = vmatprep.subr.mxu0 0.0
      %589 = vmatpush1.msra.mxu0 0.0
      %590 = vmatprep.subr.mxu0 0.0
      %591 = vmatpush1.msra.mxu0 0.0
      %592 = vmatprep.subr.mxu0 0.0
      %593 = vmatpush1.msra.mxu0 0.0
      %594 = vmatprep.subr.mxu0 0.0
      %595 = vmatpush1.msra.mxu0 0.0
      %596 = vmatprep.subr.mxu0 0.0
      %597 = vmatpush1.msra.mxu0 0.0
      %598 = vmatprep.subr.mxu0 0.0
      %599 = vmatpush1.msra.mxu0 0.0
      %600 = vmatprep.subr.mxu0 0.0
      %601 = vmatpush1.msra.mxu0 0.0
      %602 = vmatprep.subr.mxu0 0.0
      %603 = vmatpush1.msra.mxu0 0.0
      %604 = vmatprep.subr.mxu0 0.0
      %605 = vmatpush1.msra.mxu0 0.0
      %606 = vmatprep.subr.mxu0 0.0
      %607 = vmatpush1.msra.mxu0 0.0
      %608 = vmatprep.subr.mxu0 0.0
      %609 = vmatpush1.msra.mxu0 0.0
      %610 = vmatprep.subr.mxu0 0.0
      %611 = vmatpush1.msra.mxu0 0.0
      %612 = vmatprep.subr.mxu0 0.0
      %613 = vmatpush1.msra.mxu0 0.0
      %614 = vmatprep.subr.mxu0 0.0
      %615 = vmatpush1.msra.mxu0 0.0
      %616 = vmatprep.subr.mxu0 0.0
      %617 = vmatpush1.msra.mxu0 0.0
      %618 = vmatprep.subr.mxu0 0.0
      %619 = vmatpush1.msra.mxu0 0.0
      %620 = vmatprep.subr.mxu0 0.0
      %621 = vmatpush1.msra.mxu0 0.0
      %622 = vmatprep.subr.mxu0 0.0
      %623 = vmatpush1.msra.mxu0 0.0
      %624 = vmatprep.subr.mxu0 0.0
      %625 = vmatpush1.msra.mxu0 0.0
      %626 = vmatprep.subr.mxu0 0.0
      %627 = vmatpush1.msra.mxu0 0.0
      %628 = vmatprep.mubr.f32.mxu0 0.0
      %629 = vmatmul.mubr.f32.gmra.mrb[0].mxu0 %v553
      %v630 = vpop.f32.mrb[0].mxu0
      %v631 = vadd.f32 %v534, %v630
      %v632 = vpop.f32.mrb[0].mxu0
      %633 = vmatprep.mubr.f32.mxu0 0.0
      %634 = vmatmul.mubr.f32.gmra.mrb[0].mxu0 %v556
      %v635 = vpop.f32.mrb[0].mxu0
      %v636 = vadd.f32 %v539, %v635
      %v637 = vpop.f32.mrb[0].mxu0
      %638 = vmatprep.mubr.f32.mxu0 0.0
      %639 = vmatmul.mubr.f32.gmra.mrb[0].mxu0 %v559
      %v640 = vpop.f32.mrb[0].mxu0
      %v641 = vadd.f32 %v544, %v640
      %v642 = vpop.f32.mrb[0].mxu0
      %643 = vmatprep.mubr.f32.mxu0 0.0
      %644 = vmatmul.mubr.f32.gmra.mrb[0].mxu0 %v562
      %v645 = vpop.f32.mrb[0].mxu0
      %v646 = vadd.f32 %v549, %v645
      %v647 = vpop.f32.mrb[0].mxu0
      %648 = vdwg.mxu0
      %s649 = scalar_lea.vmem %s1, 32
      %v650 = vld [vmem:[%s649] sm:$0xff]
      %v651 = vld [vmem:[%s649 + $0x8] sm:$0xff]
      %v652 = vld [vmem:[%s649 + $0x10] sm:$0xff]
      %v653 = vld [vmem:[%s649 + $0x18] sm:$0xff]
      %s654 = scalar_lea.vmem %s2, 32
      %v655 = vld [vmem:[%s654] sm:$0xff]
      %v656 = vld [vmem:[%s654 + $0x8] sm:$0xff]
      %v657 = vld [vmem:[%s654 + $0x10] sm:$0xff]
      %v658 = vld [vmem:[%s654 + $0x18] sm:$0xff]
      %s659 = scalar_lea.vmem %s3, 32
      %v660 = vld [vmem:[%s659] sm:$0xff]
      %v661 = vld [vmem:[%s659 + $0x8] sm:$0xff]
      %v662 = vld [vmem:[%s659 + $0x10] sm:$0xff]
      %v663 = vld [vmem:[%s659 + $0x18] sm:$0xff]
      %s664 = scalar_lea.vmem %s4, 32
      %v665 = vld [vmem:[%s664] sm:$0xff]
      %v666 = vld [vmem:[%s664 + $0x8] sm:$0xff]
      %v667 = vld [vmem:[%s664 + $0x10] sm:$0xff]
      %v668 = vld [vmem:[%s664 + $0x18] sm:$0xff]
      %670 = vset.pattern.permute.xlu0 0
      %671 = vperm.xlu0 %670, %v650
      %v672 = vpop.permute.xlu0 %671
      %675 = vset.pattern.permute.xlu0 0
      %676 = vperm.xlu0 %675, %v651
      %v677 = vpop.permute.xlu0 %676
      %680 = vset.pattern.permute.xlu0 0
      %681 = vperm.xlu0 %680, %v652
      %v682 = vpop.permute.xlu0 %681
      %685 = vset.pattern.permute.xlu0 0
      %686 = vperm.xlu0 %685, %v653
      %v687 = vpop.permute.xlu0 %686
      %v689 = vmul.f32 %v631, %v672
      %v690 = vmul.f32 %v636, %v677
      %v691 = vmul.f32 %v641, %v682
      %v692 = vmul.f32 %v646, %v687
      %694 = vset.pattern.permute.xlu0 0
      %695 = vperm.xlu0 %694, %v655
      %v696 = vpop.permute.xlu0 %695
      %699 = vset.pattern.permute.xlu0 0
      %700 = vperm.xlu0 %699, %v656
      %v701 = vpop.permute.xlu0 %700
      %704 = vset.pattern.permute.xlu0 0
      %705 = vperm.xlu0 %704, %v657
      %v706 = vpop.permute.xlu0 %705
      %709 = vset.pattern.permute.xlu0 0
      %710 = vperm.xlu0 %709, %v658
      %v711 = vpop.permute.xlu0 %710
      %v713 = vadd.f32 %v689, %v696
      %v714 = vadd.f32 %v690, %v701
      %v715 = vadd.f32 %v691, %v706
      %v716 = vadd.f32 %v692, %v711
      %v717 = vmax.f32 %v713, 0.0
      %v718 = vmax.f32 %v714, 0.0
      %v719 = vmax.f32 %v715, 0.0
      %v720 = vmax.f32 %v716, 0.0
      %s721 = scalar_lea.vmem %s5, 32
      %v722 = vld [vmem:[%s721] sm:$0xff]
      %v723 = vld [vmem:[%s721 + $0x8] sm:$0xff]
      %v724 = vld [vmem:[%s721 + $0x10] sm:$0xff]
      %v725 = vld [vmem:[%s721 + $0x18] sm:$0xff]
      %727 = vset.pattern.permute.xlu0 0
      %728 = vperm.xlu0 %727, %v660
      %v729 = vpop.permute.xlu0 %728
      %732 = vset.pattern.permute.xlu0 0
      %733 = vperm.xlu0 %732, %v661
      %v734 = vpop.permute.xlu0 %733
      %737 = vset.pattern.permute.xlu0 0
      %738 = vperm.xlu0 %737, %v662
      %v739 = vpop.permute.xlu0 %738
      %742 = vset.pattern.permute.xlu0 0
      %743 = vperm.xlu0 %742, %v663
      %v744 = vpop.permute.xlu0 %743
      %v747 = vsel %vm409, %v722, 0
      %v750 = vsel %vm409, %v723, 0
      %v753 = vsel %vm409, %v724, 0
      %v756 = vsel %vm409, %v725, 0
      %758 = vmatprep.subr.mxu0 0.0
      %759 = vmatpush1.msra.mxu0 %v717
      %760 = vmatprep.subr.mxu0 0.0
      %761 = vmatpush1.msra.mxu0 %v718
      %762 = vmatprep.subr.mxu0 0.0
      %763 = vmatpush1.msra.mxu0 %v719
      %764 = vmatprep.subr.mxu0 0.0
      %765 = vmatpush1.msra.mxu0 %v720
      %766 = vmatprep.subr.mxu0 0.0
      %767 = vmatpush1.msra.mxu0 0.0
      %768 = vmatprep.subr.mxu0 0.0
      %769 = vmatpush1.msra.mxu0 0.0
      %770 = vmatprep.subr.mxu0 0.0
      %771 = vmatpush1.msra.mxu0 0.0
      %772 = vmatprep.subr.mxu0 0.0
      %773 = vmatpush1.msra.mxu0 0.0
      %774 = vmatprep.subr.mxu0 0.0
      %775 = vmatpush1.msra.mxu0 0.0
      %776 = vmatprep.subr.mxu0 0.0
      %777 = vmatpush1.msra.mxu0 0.0
      %778 = vmatprep.subr.mxu0 0.0
      %779 = vmatpush1.msra.mxu0 0.0
      %780 = vmatprep.subr.mxu0 0.0
      %781 = vmatpush1.msra.mxu0 0.0
      %782 = vmatprep.subr.mxu0 0.0
      %783 = vmatpush1.msra.mxu0 0.0
      %784 = vmatprep.subr.mxu0 0.0
      %785 = vmatpush1.msra.mxu0 0.0
      %786 = vmatprep.subr.mxu0 0.0
      %787 = vmatpush1.msra.mxu0 0.0
      %788 = vmatprep.subr.mxu0 0.0
      %789 = vmatpush1.msra.mxu0 0.0
      %790 = vmatprep.subr.mxu0 0.0
      %791 = vmatpush1.msra.mxu0 0.0
      %792 = vmatprep.subr.mxu0 0.0
      %793 = vmatpush1.msra.mxu0 0.0
      %794 = vmatprep.subr.mxu0 0.0
      %795 = vmatpush1.msra.mxu0 0.0
      %796 = vmatprep.subr.mxu0 0.0
      %797 = vmatpush1.msra.mxu0 0.0
      %798 = vmatprep.subr.mxu0 0.0
      %799 = vmatpush1.msra.mxu0 0.0
      %800 = vmatprep.subr.mxu0 0.0
      %801 = vmatpush1.msra.mxu0 0.0
      %802 = vmatprep.subr.mxu0 0.0
      %803 = vmatpush1.msra.mxu0 0.0
      %804 = vmatprep.subr.mxu0 0.0
      %805 = vmatpush1.msra.mxu0 0.0
      %806 = vmatprep.subr.mxu0 0.0
      %807 = vmatpush1.msra.mxu0 0.0
      %808 = vmatprep.subr.mxu0 0.0
      %809 = vmatpush1.msra.mxu0 0.0
      %810 = vmatprep.subr.mxu0 0.0
      %811 = vmatpush1.msra.mxu0 0.0
      %812 = vmatprep.subr.mxu0 0.0
      %813 = vmatpush1.msra.mxu0 0.0
      %814 = vmatprep.subr.mxu0 0.0
      %815 = vmatpush1.msra.mxu0 0.0
      %816 = vmatprep.subr.mxu0 0.0
      %817 = vmatpush1.msra.mxu0 0.0
      %818 = vmatprep.subr.mxu0 0.0
      %819 = vmatpush1.msra.mxu0 0.0
      %820 = vmatprep.subr.mxu0 0.0
      %821 = vmatpush1.msra.mxu0 0.0
      %822 = vmatprep.mubr.f32.mxu0 0.0
      %823 = vmatmul.mubr.f32.gmra.mrb[0].mxu0 %v747
      %v824 = vpop.f32.mrb[0].mxu0
      %v825 = vadd.f32 %v729, %v824
      %v826 = vpop.f32.mrb[0].mxu0
      %827 = vmatprep.mubr.f32.mxu0 0.0
      %828 = vmatmul.mubr.f32.gmra.mrb[0].mxu0 %v750
      %v829 = vpop.f32.mrb[0].mxu0
      %v830 = vadd.f32 %v734, %v829
      %v831 = vpop.f32.mrb[0].mxu0
      %832 = vmatprep.mubr.f32.mxu0 0.0
      %833 = vmatmul.mubr.f32.gmra.mrb[0].mxu0 %v753
      %v834 = vpop.f32.mrb[0].mxu0
      %v835 = vadd.f32 %v739, %v834
      %v836 = vpop.f32.mrb[0].mxu0
      %837 = vmatprep.mubr.f32.mxu0 0.0
      %838 = vmatmul.mubr.f32.gmra.mrb[0].mxu0 %v756
      %v839 = vpop.f32.mrb[0].mxu0
      %v840 = vadd.f32 %v744, %v839
      %v841 = vpop.f32.mrb[0].mxu0
      %842 = vdwg.mxu0
      %v843 = vmax.f32 %v825, 0.0
      %v844 = vmax.f32 %v830, 0.0
      %v845 = vmax.f32 %v835, 0.0
      %v846 = vmax.f32 %v840, 0.0
      %847 = vst [vmem:[#allocation3] sm:$0xff] %v843
      %848 = vst [vmem:[#allocation3 + $0x8] sm:$0xff] %v844
      %849 = vst [vmem:[#allocation3 + $0x10] sm:$0xff] %v845
      %850 = vst [vmem:[#allocation3 + $0x18] sm:$0xff] %v846
      %851 = vst [vmem:[#allocation3 + $0x20] sm:$0xff] %v631
      %852 = vst [vmem:[#allocation3 + $0x28] sm:$0xff] %v636
      %853 = vst [vmem:[#allocation3 + $0x30] sm:$0xff] %v641
      %854 = vst [vmem:[#allocation3 + $0x38] sm:$0xff] %v646
      %s855 = scalar_lea.vmem %s6, 32
      %v856 = vld [vmem:[%s855] sm:$0xff]
      %v857 = vld [vmem:[%s855 + $0x8] sm:$0xff]
      %v858 = vld [vmem:[%s855 + $0x10] sm:$0xff]
      %v859 = vld [vmem:[%s855 + $0x18] sm:$0xff]
      %v860 = vld [vmem:[#allocation3] sm:$0xff]
      %v861 = vld [vmem:[#allocation3 + $0x8] sm:$0xff]
      %v862 = vld [vmem:[#allocation3 + $0x10] sm:$0xff]
      %v863 = vld [vmem:[#allocation3 + $0x18] sm:$0xff]
      %v864 = vld [vmem:[#allocation3 + $0x20] sm:$0xff]
      %v865 = vld [vmem:[#allocation3 + $0x28] sm:$0xff]
      %v866 = vld [vmem:[#allocation3 + $0x30] sm:$0xff]
      %v867 = vld [vmem:[#allocation3 + $0x38] sm:$0xff]
      %869 = vset.pattern.permute.xlu0 0
      %870 = vperm.xlu0 %869, %v665
      %v871 = vpop.permute.xlu0 %870
      %874 = vset.pattern.permute.xlu0 0
      %875 = vperm.xlu0 %874, %v666
      %v876 = vpop.permute.xlu0 %875
      %879 = vset.pattern.permute.xlu0 0
      %880 = vperm.xlu0 %879, %v667
      %v881 = vpop.permute.xlu0 %880
      %884 = vset.pattern.permute.xlu0 0
      %885 = vperm.xlu0 %884, %v668
      %v886 = vpop.permute.xlu0 %885
      %v889 = vsel %vm551, %v856, 0
      %v892 = vsel %vm551, %v857, 0
      %v895 = vsel %vm551, %v858, 0
      %v898 = vsel %vm551, %v859, 0
      %900 = vmatprep.subr.mxu0 0.0
      %901 = vmatpush1.msra.mxu0 %v860
      %902 = vmatprep.subr.mxu0 0.0
      %903 = vmatpush1.msra.mxu0 %v861
      %904 = vmatprep.subr.mxu0 0.0
      %905 = vmatpush1.msra.mxu0 %v862
      %906 = vmatprep.subr.mxu0 0.0
      %907 = vmatpush1.msra.mxu0 %v863
      %908 = vmatprep.subr.mxu0 0.0
      %909 = vmatpush1.msra.mxu0 %v864
      %910 = vmatprep.subr.mxu0 0.0
      %911 = vmatpush1.msra.mxu0 %v865
      %912 = vmatprep.subr.mxu0 0.0
      %913 = vmatpush1.msra.mxu0 %v866
      %914 = vmatprep.subr.mxu0 0.0
      %915 = vmatpush1.msra.mxu0 %v867
      %916 = vmatprep.subr.mxu0 0.0
      %917 = vmatpush1.msra.mxu0 0.0
      %918 = vmatprep.subr.mxu0 0.0
      %919 = vmatpush1.msra.mxu0 0.0
      %920 = vmatprep.subr.mxu0 0.0
      %921 = vmatpush1.msra.mxu0 0.0
      %922 = vmatprep.subr.mxu0 0.0
      %923 = vmatpush1.msra.mxu0 0.0
      %924 = vmatprep.subr.mxu0 0.0
      %925 = vmatpush1.msra.mxu0 0.0
      %926 = vmatprep.subr.mxu0 0.0
      %927 = vmatpush1.msra.mxu0 0.0
      %928 = vmatprep.subr.mxu0 0.0
      %929 = vmatpush1.msra.mxu0 0.0
      %930 = vmatprep.subr.mxu0 0.0
      %931 = vmatpush1.msra.mxu0 0.0
      %932 = vmatprep.subr.mxu0 0.0
      %933 = vmatpush1.msra.mxu0 0.0
      %934 = vmatprep.subr.mxu0 0.0
      %935 = vmatpush1.msra.mxu0 0.0
      %936 = vmatprep.subr.mxu0 0.0
      %937 = vmatpush1.msra.mxu0 0.0
      %938 = vmatprep.subr.mxu0 0.0
      %939 = vmatpush1.msra.mxu0 0.0
      %940 = vmatprep.subr.mxu0 0.0
      %941 = vmatpush1.msra.mxu0 0.0
      %942 = vmatprep.subr.mxu0 0.0
      %943 = vmatpush1.msra.mxu0 0.0
      %944 = vmatprep.subr.mxu0 0.0
      %945 = vmatpush1.msra.mxu0 0.0
      %946 = vmatprep.subr.mxu0 0.0
      %947 = vmatpush1.msra.mxu0 0.0
      %948 = vmatprep.subr.mxu0 0.0
      %949 = vmatpush1.msra.mxu0 0.0
      %950 = vmatprep.subr.mxu0 0.0
      %951 = vmatpush1.msra.mxu0 0.0
      %952 = vmatprep.subr.mxu0 0.0
      %953 = vmatpush1.msra.mxu0 0.0
      %954 = vmatprep.subr.mxu0 0.0
      %955 = vmatpush1.msra.mxu0 0.0
      %956 = vmatprep.subr.mxu0 0.0
      %957 = vmatpush1.msra.mxu0 0.0
      %958 = vmatprep.subr.mxu0 0.0
      %959 = vmatpush1.msra.mxu0 0.0
      %960 = vmatprep.subr.mxu0 0.0
      %961 = vmatpush1.msra.mxu0 0.0
      %962 = vmatprep.subr.mxu0 0.0
      %963 = vmatpush1.msra.mxu0 0.0
      %964 = vmatprep.mubr.f32.mxu0 0.0
      %965 = vmatmul.mubr.f32.gmra.mrb[0].mxu0 %v889
      %v966 = vpop.f32.mrb[0].mxu0
      %v967 = vadd.f32 %v871, %v966
      %v968 = vpop.f32.mrb[0].mxu0
      %969 = vmatprep.mubr.f32.mxu0 0.0
      %970 = vmatmul.mubr.f32.gmra.mrb[0].mxu0 %v892
      %v971 = vpop.f32.mrb[0].mxu0
      %v972 = vadd.f32 %v876, %v971
      %v973 = vpop.f32.mrb[0].mxu0
      %974 = vmatprep.mubr.f32.mxu0 0.0
      %975 = vmatmul.mubr.f32.gmra.mrb[0].mxu0 %v895
      %v976 = vpop.f32.mrb[0].mxu0
      %v977 = vadd.f32 %v881, %v976
      %v978 = vpop.f32.mrb[0].mxu0
      %979 = vmatprep.mubr.f32.mxu0 0.0
      %980 = vmatmul.mubr.f32.gmra.mrb[0].mxu0 %v898
      %v981 = vpop.f32.mrb[0].mxu0
      %v982 = vadd.f32 %v886, %v981
      %v983 = vpop.f32.mrb[0].mxu0
      %984 = vdwg.mxu0
      %s985 = scalar_lea.vmem %s1, 64
      %v986 = vld [vmem:[%s985] sm:$0xff]
      %v987 = vld [vmem:[%s985 + $0x8] sm:$0xff]
      %v988 = vld [vmem:[%s985 + $0x10] sm:$0xff]
      %v989 = vld [vmem:[%s985 + $0x18] sm:$0xff]
      %s990 = scalar_lea.vmem %s2, 64
      %v991 = vld [vmem:[%s990] sm:$0xff]
      %v992 = vld [vmem:[%s990 + $0x8] sm:$0xff]
      %v993 = vld [vmem:[%s990 + $0x10] sm:$0xff]
      %v994 = vld [vmem:[%s990 + $0x18] sm:$0xff]
      %s995 = scalar_lea.vmem %s3, 64
      %v996 = vld [vmem:[%s995] sm:$0xff]
      %v997 = vld [vmem:[%s995 + $0x8] sm:$0xff]
      %v998 = vld [vmem:[%s995 + $0x10] sm:$0xff]
      %v999 = vld [vmem:[%s995 + $0x18] sm:$0xff]
      %s1000 = scalar_lea.vmem %s4, 64
      %v1001 = vld [vmem:[%s1000] sm:$0xff]
      %v1002 = vld [vmem:[%s1000 + $0x8] sm:$0xff]
      %v1003 = vld [vmem:[%s1000 + $0x10] sm:$0xff]
      %v1004 = vld [vmem:[%s1000 + $0x18] sm:$0xff]
      %1006 = vset.pattern.permute.xlu0 0
      %1007 = vperm.xlu0 %1006, %v986
      %v1008 = vpop.permute.xlu0 %1007
      %1011 = vset.pattern.permute.xlu0 0
      %1012 = vperm.xlu0 %1011, %v987
      %v1013 = vpop.permute.xlu0 %1012
      %1016 = vset.pattern.permute.xlu0 0
      %1017 = vperm.xlu0 %1016, %v988
      %v1018 = vpop.permute.xlu0 %1017
      %1021 = vset.pattern.permute.xlu0 0
      %1022 = vperm.xlu0 %1021, %v989
      %v1023 = vpop.permute.xlu0 %1022
      %v1025 = vmul.f32 %v967, %v1008
      %v1026 = vmul.f32 %v972, %v1013
      %v1027 = vmul.f32 %v977, %v1018
      %v1028 = vmul.f32 %v982, %v1023
      %1030 = vset.pattern.permute.xlu0 0
      %1031 = vperm.xlu0 %1030, %v991
      %v1032 = vpop.permute.xlu0 %1031
      %1035 = vset.pattern.permute.xlu0 0
      %1036 = vperm.xlu0 %1035, %v992
      %v1037 = vpop.permute.xlu0 %1036
      %1040 = vset.pattern.permute.xlu0 0
      %1041 = vperm.xlu0 %1040, %v993
      %v1042 = vpop.permute.xlu0 %1041
      %1045 = vset.pattern.permute.xlu0 0
      %1046 = vperm.xlu0 %1045, %v994
      %v1047 = vpop.permute.xlu0 %1046
      %v1049 = vadd.f32 %v1025, %v1032
      %v1050 = vadd.f32 %v1026, %v1037
      %v1051 = vadd.f32 %v1027, %v1042
      %v1052 = vadd.f32 %v1028, %v1047
      %v1053 = vmax.f32 %v1049, 0.0
      %v1054 = vmax.f32 %v1050, 0.0
      %v1055 = vmax.f32 %v1051, 0.0
      %v1056 = vmax.f32 %v1052, 0.0
      %s1057 = scalar_lea.vmem %s5, 64
      %v1058 = vld [vmem:[%s1057] sm:$0xff]
      %v1059 = vld [vmem:[%s1057 + $0x8] sm:$0xff]
      %v1060 = vld [vmem:[%s1057 + $0x10] sm:$0xff]
      %v1061 = vld [vmem:[%s1057 + $0x18] sm:$0xff]
      %1063 = vset.pattern.permute.xlu0 0
      %1064 = vperm.xlu0 %1063, %v996
      %v1065 = vpop.permute.xlu0 %1064
      %1068 = vset.pattern.permute.xlu0 0
      %1069 = vperm.xlu0 %1068, %v997
      %v1070 = vpop.permute.xlu0 %1069
      %1073 = vset.pattern.permute.xlu0 0
      %1074 = vperm.xlu0 %1073, %v998
      %v1075 = vpop.permute.xlu0 %1074
      %1078 = vset.pattern.permute.xlu0 0
      %1079 = vperm.xlu0 %1078, %v999
      %v1080 = vpop.permute.xlu0 %1079
      %v1083 = vsel %vm409, %v1058, 0
      %v1086 = vsel %vm409, %v1059, 0
      %v1089 = vsel %vm409, %v1060, 0
      %v1092 = vsel %vm409, %v1061, 0
      %1094 = vmatprep.subr.mxu0 0.0
      %1095 = vmatpush1.msra.mxu0 %v1053
      %1096 = vmatprep.subr.mxu0 0.0
      %1097 = vmatpush1.msra.mxu0 %v1054
      %1098 = vmatprep.subr.mxu0 0.0
      %1099 = vmatpush1.msra.mxu0 %v1055
      %1100 = vmatprep.subr.mxu0 0.0
      %1101 = vmatpush1.msra.mxu0 %v1056
      %1102 = vmatprep.subr.mxu0 0.0
      %1103 = vmatpush1.msra.mxu0 0.0
      %1104 = vmatprep.subr.mxu0 0.0
      %1105 = vmatpush1.msra.mxu0 0.0
      %1106 = vmatprep.subr.mxu0 0.0
      %1107 = vmatpush1.msra.mxu0 0.0
      %1108 = vmatprep.subr.mxu0 0.0
      %1109 = vmatpush1.msra.mxu0 0.0
      %1110 = vmatprep.subr.mxu0 0.0
      %1111 = vmatpush1.msra.mxu0 0.0
      %1112 = vmatprep.subr.mxu0 0.0
      %1113 = vmatpush1.msra.mxu0 0.0
      %1114 = vmatprep.subr.mxu0 0.0
      %1115 = vmatpush1.msra.mxu0 0.0
      %1116 = vmatprep.subr.mxu0 0.0
      %1117 = vmatpush1.msra.mxu0 0.0
      %1118 = vmatprep.subr.mxu0 0.0
      %1119 = vmatpush1.msra.mxu0 0.0
      %1120 = vmatprep.subr.mxu0 0.0
      %1121 = vmatpush1.msra.mxu0 0.0
      %1122 = vmatprep.subr.mxu0 0.0
      %1123 = vmatpush1.msra.mxu0 0.0
      %1124 = vmatprep.subr.mxu0 0.0
      %1125 = vmatpush1.msra.mxu0 0.0
      %1126 = vmatprep.subr.mxu0 0.0
      %1127 = vmatpush1.msra.mxu0 0.0
      %1128 = vmatprep.subr.mxu0 0.0
      %1129 = vmatpush1.msra.mxu0 0.0
      %1130 = vmatprep.subr.mxu0 0.0
      %1131 = vmatpush1.msra.mxu0 0.0
      %1132 = vmatprep.subr.mxu0 0.0
      %1133 = vmatpush1.msra.mxu0 0.0
      %1134 = vmatprep.subr.mxu0 0.0
      %1135 = vmatpush1.msra.mxu0 0.0
      %1136 = vmatprep.subr.mxu0 0.0
      %1137 = vmatpush1.msra.mxu0 0.0
      %1138 = vmatprep.subr.mxu0 0.0
      %1139 = vmatpush1.msra.mxu0 0.0
      %1140 = vmatprep.subr.mxu0 0.0
      %1141 = vmatpush1.msra.mxu0 0.0
      %1142 = vmatprep.subr.mxu0 0.0
      %1143 = vmatpush1.msra.mxu0 0.0
      %1144 = vmatprep.subr.mxu0 0.0
      %1145 = vmatpush1.msra.mxu0 0.0
      %1146 = vmatprep.subr.mxu0 0.0
      %1147 = vmatpush1.msra.mxu0 0.0
      %1148 = vmatprep.subr.mxu0 0.0
      %1149 = vmatpush1.msra.mxu0 0.0
      %1150 = vmatprep.subr.mxu0 0.0
      %1151 = vmatpush1.msra.mxu0 0.0
      %1152 = vmatprep.subr.mxu0 0.0
      %1153 = vmatpush1.msra.mxu0 0.0
      %1154 = vmatprep.subr.mxu0 0.0
      %1155 = vmatpush1.msra.mxu0 0.0
      %1156 = vmatprep.subr.mxu0 0.0
      %1157 = vmatpush1.msra.mxu0 0.0
      %1158 = vmatprep.mubr.f32.mxu0 0.0
      %1159 = vmatmul.mubr.f32.gmra.mrb[0].mxu0 %v1083
      %v1160 = vpop.f32.mrb[0].mxu0
      %v1161 = vadd.f32 %v1065, %v1160
      %v1162 = vpop.f32.mrb[0].mxu0
      %1163 = vmatprep.mubr.f32.mxu0 0.0
      %1164 = vmatmul.mubr.f32.gmra.mrb[0].mxu0 %v1086
      %v1165 = vpop.f32.mrb[0].mxu0
      %v1166 = vadd.f32 %v1070, %v1165
      %v1167 = vpop.f32.mrb[0].mxu0
      %1168 = vmatprep.mubr.f32.mxu0 0.0
      %1169 = vmatmul.mubr.f32.gmra.mrb[0].mxu0 %v1089
      %v1170 = vpop.f32.mrb[0].mxu0
      %v1171 = vadd.f32 %v1075, %v1170
      %v1172 = vpop.f32.mrb[0].mxu0
      %1173 = vmatprep.mubr.f32.mxu0 0.0
      %1174 = vmatmul.mubr.f32.gmra.mrb[0].mxu0 %v1092
      %v1175 = vpop.f32.mrb[0].mxu0
      %v1176 = vadd.f32 %v1080, %v1175
      %v1177 = vpop.f32.mrb[0].mxu0
      %1178 = vdwg.mxu0
      %v1179 = vmax.f32 %v1161, 0.0
      %v1180 = vmax.f32 %v1166, 0.0
      %v1181 = vmax.f32 %v1171, 0.0
      %v1182 = vmax.f32 %v1176, 0.0
      %1183 = vst [vmem:[#allocation3] sm:$0xff] %v1179
      %1184 = vst [vmem:[#allocation3 + $0x8] sm:$0xff] %v1180
      %1185 = vst [vmem:[#allocation3 + $0x10] sm:$0xff] %v1181
      %1186 = vst [vmem:[#allocation3 + $0x18] sm:$0xff] %v1182
      %1187 = vst [vmem:[#allocation3 + $0x20] sm:$0xff] %v967
      %1188 = vst [vmem:[#allocation3 + $0x28] sm:$0xff] %v972
      %1189 = vst [vmem:[#allocation3 + $0x30] sm:$0xff] %v977
      %1190 = vst [vmem:[#allocation3 + $0x38] sm:$0xff] %v982
      %s1191 = scalar_lea.vmem %s6, 64
      %v1192 = vld [vmem:[%s1191] sm:$0xff]
      %v1193 = vld [vmem:[%s1191 + $0x8] sm:$0xff]
      %v1194 = vld [vmem:[%s1191 + $0x10] sm:$0xff]
      %v1195 = vld [vmem:[%s1191 + $0x18] sm:$0xff]
      %v1196 = vld [vmem:[#allocation3] sm:$0xff]
      %v1197 = vld [vmem:[#allocation3 + $0x8] sm:$0xff]
      %v1198 = vld [vmem:[#allocation3 + $0x10] sm:$0xff]
      %v1199 = vld [vmem:[#allocation3 + $0x18] sm:$0xff]
      %v1200 = vld [vmem:[#allocation3 + $0x20] sm:$0xff]
      %v1201 = vld [vmem:[#allocation3 + $0x28] sm:$0xff]
      %v1202 = vld [vmem:[#allocation3 + $0x30] sm:$0xff]
      %v1203 = vld [vmem:[#allocation3 + $0x38] sm:$0xff]
      %1205 = vset.pattern.permute.xlu0 0
      %1206 = vperm.xlu0 %1205, %v1001
      %v1207 = vpop.permute.xlu0 %1206
      %1210 = vset.pattern.permute.xlu0 0
      %1211 = vperm.xlu0 %1210, %v1002
      %v1212 = vpop.permute.xlu0 %1211
      %1215 = vset.pattern.permute.xlu0 0
      %1216 = vperm.xlu0 %1215, %v1003
      %v1217 = vpop.permute.xlu0 %1216
      %1220 = vset.pattern.permute.xlu0 0
      %1221 = vperm.xlu0 %1220, %v1004
      %v1222 = vpop.permute.xlu0 %1221
      %v1225 = vsel %vm551, %v1192, 0
      %v1228 = vsel %vm551, %v1193, 0
      %v1231 = vsel %vm551, %v1194, 0
      %v1234 = vsel %vm551, %v1195, 0
      %1236 = vmatprep.subr.mxu0 0.0
      %1237 = vmatpush1.msra.mxu0 %v1196
      %1238 = vmatprep.subr.mxu0 0.0
      %1239 = vmatpush1.msra.mxu0 %v1197
      %1240 = vmatprep.subr.mxu0 0.0
      %1241 = vmatpush1.msra.mxu0 %v1198
      %1242 = vmatprep.subr.mxu0 0.0
      %1243 = vmatpush1.msra.mxu0 %v1199
      %1244 = vmatprep.subr.mxu0 0.0
      %1245 = vmatpush1.msra.mxu0 %v1200
      %1246 = vmatprep.subr.mxu0 0.0
      %1247 = vmatpush1.msra.mxu0 %v1201
      %1248 = vmatprep.subr.mxu0 0.0
      %1249 = vmatpush1.msra.mxu0 %v1202
      %1250 = vmatprep.subr.mxu0 0.0
      %1251 = vmatpush1.msra.mxu0 %v1203
      %1252 = vmatprep.subr.mxu0 0.0
      %1253 = vmatpush1.msra.mxu0 0.0
      %1254 = vmatprep.subr.mxu0 0.0
      %1255 = vmatpush1.msra.mxu0 0.0
      %1256 = vmatprep.subr.mxu0 0.0
      %1257 = vmatpush1.msra.mxu0 0.0
      %1258 = vmatprep.subr.mxu0 0.0
      %1259 = vmatpush1.msra.mxu0 0.0
      %1260 = vmatprep.subr.mxu0 0.0
      %1261 = vmatpush1.msra.mxu0 0.0
      %1262 = vmatprep.subr.mxu0 0.0
      %1263 = vmatpush1.msra.mxu0 0.0
      %1264 = vmatprep.subr.mxu0 0.0
      %1265 = vmatpush1.msra.mxu0 0.0
      %1266 = vmatprep.subr.mxu0 0.0
      %1267 = vmatpush1.msra.mxu0 0.0
      %1268 = vmatprep.subr.mxu0 0.0
      %1269 = vmatpush1.msra.mxu0 0.0
      %1270 = vmatprep.subr.mxu0 0.0
      %1271 = vmatpush1.msra.mxu0 0.0
      %1272 = vmatprep.subr.mxu0 0.0
      %1273 = vmatpush1.msra.mxu0 0.0
      %1274 = vmatprep.subr.mxu0 0.0
      %1275 = vmatpush1.msra.mxu0 0.0
      %1276 = vmatprep.subr.mxu0 0.0
      %1277 = vmatpush1.msra.mxu0 0.0
      %1278 = vmatprep.subr.mxu0 0.0
      %1279 = vmatpush1.msra.mxu0 0.0
      %1280 = vmatprep.subr.mxu0 0.0
      %1281 = vmatpush1.msra.mxu0 0.0
      %1282 = vmatprep.subr.mxu0 0.0
      %1283 = vmatpush1.msra.mxu0 0.0
      %1284 = vmatprep.subr.mxu0 0.0
      %1285 = vmatpush1.msra.mxu0 0.0
      %1286 = vmatprep.subr.mxu0 0.0
      %1287 = vmatpush1.msra.mxu0 0.0
      %1288 = vmatprep.subr.mxu0 0.0
      %1289 = vmatpush1.msra.mxu0 0.0
      %1290 = vmatprep.subr.mxu0 0.0
      %1291 = vmatpush1.msra.mxu0 0.0
      %1292 = vmatprep.subr.mxu0 0.0
      %1293 = vmatpush1.msra.mxu0 0.0
      %1294 = vmatprep.subr.mxu0 0.0
      %1295 = vmatpush1.msra.mxu0 0.0
      %1296 = vmatprep.subr.mxu0 0.0
      %1297 = vmatpush1.msra.mxu0 0.0
      %1298 = vmatprep.subr.mxu0 0.0
      %1299 = vmatpush1.msra.mxu0 0.0
      %1300 = vmatprep.mubr.f32.mxu0 0.0
      %1301 = vmatmul.mubr.f32.gmra.mrb[0].mxu0 %v1225
      %v1302 = vpop.f32.mrb[0].mxu0
      %v1303 = vadd.f32 %v1207, %v1302
      %v1304 = vpop.f32.mrb[0].mxu0
      %1305 = vmatprep.mubr.f32.mxu0 0.0
      %1306 = vmatmul.mubr.f32.gmra.mrb[0].mxu0 %v1228
      %v1307 = vpop.f32.mrb[0].mxu0
      %v1308 = vadd.f32 %v1212, %v1307
      %v1309 = vpop.f32.mrb[0].mxu0
      %1310 = vmatprep.mubr.f32.mxu0 0.0
      %1311 = vmatmul.mubr.f32.gmra.mrb[0].mxu0 %v1231
      %v1312 = vpop.f32.mrb[0].mxu0
      %v1313 = vadd.f32 %v1217, %v1312
      %v1314 = vpop.f32.mrb[0].mxu0
      %1315 = vmatprep.mubr.f32.mxu0 0.0
      %1316 = vmatmul.mubr.f32.gmra.mrb[0].mxu0 %v1234
      %v1317 = vpop.f32.mrb[0].mxu0
      %v1318 = vadd.f32 %v1222, %v1317
      %v1319 = vpop.f32.mrb[0].mxu0
      %1320 = vdwg.mxu0
      %1321 = vst [vmem:[%s306] sm:$0xff] %v1303
      %1322 = vst [vmem:[%s306 + $0x8] sm:$0xff] %v1308
      %1323 = vst [vmem:[%s306 + $0x10] sm:$0xff] %v1313
      %1324 = vst [vmem:[%s306 + $0x18] sm:$0xff] %v1318
      %p1325 = scmp.lt.s32.totalorder %s22, 1
      %s1326 = scalar_select %p1325, %s22, 1
      %p1327 = scmp.lt.s32.totalorder %s23, 0
      %s1328 = scalar_select %p1327, %s23, 0
      %s1329 = smul.addr %s1326, 4
      %s1330 = sadd.s32 %s1328, %s1329
      %s1331 = smul.addr %s1330, 8
      %s1332 = scalar_lea.vmem %s7, %s1331
      // Predicated region
      $region49: #{feature_generator_forward.1} parent=47 // pred_check
        %p1333 = pneg %p204
      $region50: #{feature_generator_forward.1} parent=47 // pred_check_branch
        %1335 = sbr.rel (%p1333) target = $region52
      $region51: #{feature_generator_forward.1} parent=47 // pred_region
        _
      $region52: #{feature_generator_forward.1} parent=47 // pred_fallthru
        _
    $region48: #{feature_generator_forward.1} parent=5 // pred_fallthru
      _
    %p1336 = scmp.le.s32.totalorder 2, %s13
    // Predicated region
    $region53: #{feature_generator_forward.1} parent=5 // pred_check
      %p1337 = pneg %p1336
    $region54: #{feature_generator_forward.1} parent=5 // pred_check_branch
      %1339 = sbr.rel (%p1337) target = $region56
    $region55: #{feature_generator_forward.1} parent=5 // pred_region
      %s1340 = ssub.s32 %s13, 2
      // Predicated region
      $region57: #{feature_generator_forward.1} parent=55 // pred_check
        %p1341 = pneg %p210
      $region58: #{feature_generator_forward.1} parent=55 // pred_check_branch
        %1343 = sbr.rel (%p1341) target = $region60
      $region59: #{feature_generator_forward.1} parent=55 // pred_region
        %p1344 = scmp.lt.s32.totalorder %s24, 1
        %s1345 = scalar_select %p1344, %s24, 1
        %p1346 = scmp.lt.s32.totalorder %s25, 0
        %s1347 = scalar_select %p1346, %s25, 0
        %s1348 = smul.addr %s1345, 4
        %s1349 = sadd.s32 %s1347, %s1348
        %s1350 = smul.addr %s1349, 8
        %s1351 = scalar_lea.vmem %s7, %s1350
      $region60: #{feature_generator_forward.1} parent=55 // pred_fallthru
        _
    $region56: #{feature_generator_forward.1} parent=5 // pred_fallthru
      _
  $region6: #{feature_generator_forward.1} parent=0 // loop_footer
    %s17 = sadd.s32 1, %s13
  $region7: #{feature_generator_forward.1} parent=0 // loop_footer_branch
    %12 = sbr.rel target = $region3
  $region8: #{feature_generator_forward.1} parent=0 // loop_exit
    _

</llo_original>
